<compile_context>
chip_gen: v6e
topology: v6e:2x2x1
jax: 0.10.0
libtpu: 0.0.40
codegen_flags: <defaults>
</compile_context>

<pallas_src>
import functools

import jax
import jax.numpy as jnp
from jax.experimental import pallas as pl
from jax.experimental.pallas import tpu as pltpu


def _pick_tile(dim, candidates):
    """Largest candidate tile that evenly divides dim, else the full extent."""
    for c in candidates:
        if c <= dim and dim % c == 0:
            return c
    return dim


def _vmem_limit_bytes():
    """Per-chip scoped-VMEM limit: headroom below physical, capped at 100 MiB."""
    try:
        cap = int(getattr(pltpu.get_tpu_info(), "vmem_capacity_bytes", 0))
    except Exception:
        cap = 0
    if cap <= 0:
        cap = 64 * 1024 * 1024  # conservative (v7x-sized) fallback
    return min((cap * 7) // 8, 100 * 1024 * 1024)


# --------------------------------------------------------------------------
# Kernel 1: c_attn linear projection  y = x2d @ W^T + b   (tiled, pipelined)
# --------------------------------------------------------------------------
def _proj_kernel(x_ref, w_ref, b_ref, o_ref, acc_ref):
    @pl.when(pl.program_id(2) == 0)
    def _():
        acc_ref[...] = jnp.zeros_like(acc_ref)

    acc_ref[...] += jnp.dot(x_ref[...], w_ref[...],
                            preferred_element_type=jnp.float32)

    @pl.when(pl.program_id(2) == pl.num_programs(2) - 1)
    def _():
        o_ref[...] = (acc_ref[...] + b_ref[...]).astype(o_ref.dtype)


def c_attn_proj(x2d, w_t, b2d):
    """x2d: (M, K); w_t: (K, N) pre-transposed weight; b2d: (1, N) -> (M, N)."""
    m, k = x2d.shape
    n = w_t.shape[1]
    tm = _pick_tile(m, (512, 256, 128, 64, 32, 16, 8))
    tn = _pick_tile(n, (512, 256, 128))
    tk = _pick_tile(k, (512, 256, 128))
    assert tm <= 1024 and tn <= 1024 and tk <= 1024, (
        "c_attn_proj: no aligned tile divides the problem; falling back to the "
        "full extent would blow VMEM — pad M/N/K to multiples of 128.")
    grid = (m // tm, n // tn, k // tk)
    return pl.pallas_call(
        _proj_kernel,
        out_shape=jax.ShapeDtypeStruct((m, n), x2d.dtype),
        grid=grid,
        in_specs=[
            pl.BlockSpec((tm, tk), lambda i, j, kk: (i, kk)),
            pl.BlockSpec((tk, tn), lambda i, j, kk: (kk, j)),
            pl.BlockSpec((1, tn), lambda i, j, kk: (0, j)),
        ],
        out_specs=pl.BlockSpec((tm, tn), lambda i, j, kk: (i, j)),
        scratch_shapes=[pltpu.VMEM((tm, tn), jnp.float32)],
        compiler_params=pltpu.CompilerParams(
            dimension_semantics=("parallel", "parallel", "arbitrary"),
            vmem_limit_bytes=_vmem_limit_bytes()),
    )(x2d, w_t, b2d)


# --------------------------------------------------------------------------
# Kernel 2: shaped causal attention (flash-style, kv-block streamed).
#   Grid: (batch, query-block, kv-block).  Heads are sliced from the lane
#   dim inside the kernel; the final store is a single lane-dense (tq, C)
#   write.
# --------------------------------------------------------------------------
def _shaped_attn_kernel(abg_ref, q_ref, k_ref, v_ref, o_ref,
                        m_sc, l_sc, acc_sc, extra_sc, *, n_head):
    qi = pl.program_id(1)
    ki = pl.program_id(2)
    nk = pl.num_programs(2)

    tq = q_ref.shape[1]
    tkv = k_ref.shape[1]
    c = q_ref.shape[2]
    hd = c // n_head

    row0 = pl.multiple_of(qi * tq, tq)
    kv0 = pl.multiple_of(ki * tkv, tkv)

    alpha = abg_ref[0]
    beta = abg_ref[1]
    gamma = abg_ref[2]

    @pl.when(ki == 0)
    def _():
        m_sc[...] = jnp.full_like(m_sc, -jnp.inf)
        l_sc[...] = jnp.zeros_like(l_sc)
        acc_sc[...] = jnp.zeros_like(acc_sc)
        extra_sc[...] = jnp.zeros_like(extra_sc)

    # Causal block skipping: kv block entirely above the diagonal contributes
    # nothing (all entries masked, MC/Id weights all zero).
    @pl.when(kv0 <= row0 + tq - 1)
    def _():
        # Causal structure for this (query-block, kv-block) tile, built from a
        # single (tq, tkv) iota + a (tq, 1) row-id vector.
        row_ids = row0 + jax.lax.broadcasted_iota(jnp.int32, (tq, 1), 0)  # (tq,1)
        rel = row_ids - kv0                                               # (tq,1)
        cols = jax.lax.broadcasted_iota(jnp.int32, (tq, tkv), 1)          # (tq,tkv)
        causal = cols <= rel                                              # (tq,tkv)

        # (alpha*Id - gamma*MC) @ v, accumulated block-by-block with one
        # full-width matmul.  MC[i,j] = (j<=i)/(i+1) == softmax(1e4*tril) in
        # f32; Id == softmax(1e4*eye) == identity in f32.
        g_inv_row = gamma / (row_ids.astype(jnp.float32) + 1.0)           # (tq,1)
        w_extra = (jnp.where(cols == rel, alpha, 0.0)
                   - causal.astype(jnp.float32) * g_inv_row)              # (tq,tkv)
        v_blk = v_ref[0]                                                  # (tkv, C)
        extra_sc[...] += jnp.dot(w_extra, v_blk,
                                 preferred_element_type=jnp.float32)

        # Online-softmax attention, per head (n_head is static -> unrolled).
        for h in range(n_head):
            lo = h * hd
            qh = q_ref[0, :, lo:lo + hd]     # (tq, hd)  scale folded into W_q
            kh = k_ref[0, :, lo:lo + hd]     # (tkv, hd)
            vh = v_ref[0, :, lo:lo + hd]     # (tkv, hd)

            s = jax.lax.dot_general(qh, kh, (((1,), (1,)), ((), ())),
                                    preferred_element_type=jnp.float32)  # (tq,tkv)
            s = jnp.where(causal, s, -jnp.inf)

            m_prev = m_sc[h]                                              # (tq,1)
            m_new = jnp.maximum(m_prev, jnp.max(s, axis=-1, keepdims=True))
            corr = jnp.exp(m_prev - m_new)
            p = jnp.exp(s - m_new)
            l_sc[h] = corr * l_sc[h] + jnp.sum(p, axis=-1, keepdims=True)
            acc_sc[h] = corr * acc_sc[h] + jnp.dot(
                p, vh, preferred_element_type=jnp.float32)
            m_sc[h] = m_new

    @pl.when(ki == nk - 1)
    def _():
        # beta folded into the normalization (exact divide on a (tq,1) vector).
        outs = []
        for h in range(n_head):
            inv = beta / l_sc[h]                     # (tq,1)
            outs.append(acc_sc[h] * inv)             # (tq,hd)
        y = jnp.concatenate(outs, axis=-1) + extra_sc[...]   # (tq, C)
        o_ref[0] = y.astype(o_ref.dtype)             # single lane-dense store


def shaped_attention(qk, v, abg, n_head, tq=None):
    """qk: (B, T, 2C) packed c_attn output; v: (B, T, C); abg: (3,) -> (B, T, C)."""
    B, T, C = v.shape
    assert C % n_head == 0
    hd = C // n_head
    if tq is None:
        tq = _pick_tile(T, (128, 64, 32, 16, 8))
    assert T % tq == 0, f"tq={tq} must divide T={T}"
    assert tq <= 512, (
        "shaped_attention: query tile fell back to a huge extent "
        f"(tq={tq}); pad T to a multiple of 8 to keep VMEM bounded.")
    tkv = tq
    grid = (B, T // tq, T // tkv)
    kernel = functools.partial(_shaped_attn_kernel, n_head=n_head)
    return pl.pallas_call(
        kernel,
        out_shape=jax.ShapeDtypeStruct((B, T, C), v.dtype),
        grid=grid,
        in_specs=[
            pl.BlockSpec(memory_space=pltpu.MemorySpace.SMEM),      # alpha/beta/gamma
            pl.BlockSpec((1, tq, C), lambda b, qi, ki: (b, qi, 0)),  # q: cols [0:C)
            pl.BlockSpec((1, tkv, C), lambda b, qi, ki: (b, ki, 1)), # k: cols [C:2C)
            pl.BlockSpec((1, tkv, C), lambda b, qi, ki: (b, ki, 0)), # v
        ],
        out_specs=pl.BlockSpec((1, tq, C), lambda b, qi, ki: (b, qi, 0)),
        scratch_shapes=[
            pltpu.VMEM((n_head, tq, 1), jnp.float32),   # running max m
            pltpu.VMEM((n_head, tq, 1), jnp.float32),   # running denom l
            pltpu.VMEM((n_head, tq, hd), jnp.float32),  # running softmax @ v
            pltpu.VMEM((tq, C), jnp.float32),           # (alpha*Id - gamma*MC) @ v
        ],
        compiler_params=pltpu.CompilerParams(
            dimension_semantics=("parallel", "parallel", "arbitrary"),
            vmem_limit_bytes=_vmem_limit_bytes()),
    )(abg, qk, qk, v)


# --------------------------------------------------------------------------
# Module-level wrapper (glue in plain JAX, hot path in Pallas)
# --------------------------------------------------------------------------
def causal_shaped_attention_forward(x, params, n_head, tq=None):
    B, T, C = x.shape
    qk = c_attn_proj(x.reshape(B * T, C),
                     params["c_attn_wT"], params["c_attn_b2d"])
    qk = qk.reshape(B, T, 2 * C)
    abg = jnp.stack([params["alpha"], params["beta"], params["gamma"]])
    # use_v = False -> v is x; use_proj = False -> no output projection.
    # TODO(synk): attn_dropout is train-mode only; eval (identity) path implemented.
    return shaped_attention(qk, x, abg, n_head, tq=tq)


# --------------------------------------------------------------------------
# Deterministic parameter / buffer construction (mirrors __init__ + custom init)
# --------------------------------------------------------------------------
def make_params_and_buffers(key, n_embd, n_head, block_size, custom_init=True):
    kw = jax.random.split(key, 2)
    c_out = 2 * n_embd  # num_var_to_pack = 2 (use_v=False)
    w = 0.02 * jax.random.normal(kw[0], (c_out, n_embd), dtype=jnp.float32)
    b = 0.01 * jax.random.normal(kw[1], (c_out,), dtype=jnp.float32)
    if custom_init:
        # custom_variable_initialization: zero the rows [n_embd : 2*n_embd]
        w = w.at[n_embd:].set(0.0)
        b = b.at[n_embd:].set(0.0)
    # Pre-transpose the weight once and fold hd**-0.5 into the query half of
    # the projection (weight columns / bias entries [0 : n_embd)).
    hd = n_embd // n_head
    scale = jnp.float32(hd ** -0.5)
    w_t = w.T                                   # (C, 2C)
    w_t = w_t.at[:, :n_embd].multiply(scale)
    b_scaled = b.at[:n_embd].multiply(scale)
    params = dict(
        c_attn_w=w, c_attn_b=b,                 # used by the pure-JAX reference
        c_attn_wT=w_t,
        c_attn_b2d=b_scaled.reshape(1, c_out),
        alpha=jnp.float32(1.0), beta=jnp.float32(0.1), gamma=jnp.float32(0.1),
    )
    tril = jnp.tril(jnp.ones((block_size, block_size), dtype=jnp.float32))
    mc = jax.nn.softmax(10000.0 * tril, axis=-1)
    idm = jax.nn.softmax(10000.0 * jnp.eye(block_size, dtype=jnp.float32), axis=-1)
    buffers = dict(MC=mc, Id=idm)               # only the reference uses these
    return params, buffers


# --------------------------------------------------------------------------
# Pure-JAX reference (mirrors the PyTorch forward) for a sanity check
# --------------------------------------------------------------------------
def reference_forward(x, params, buffers, n_head):
    B, T, C = x.shape
    hd = C // n_head
    qk = x @ params["c_attn_w"].T + params["c_attn_b"]
    q, k = qk[..., :C], qk[..., C:]
    v = x
    qh = q.reshape(B, T, n_head, hd).transpose(0, 2, 1, 3)
    kh = k.reshape(B, T, n_head, hd).transpose(0, 2, 1, 3)
    vh = v.reshape(B, T, n_head, hd).transpose(0, 2, 1, 3)
    mc = buffers["MC"][:T, :T][None, None]
    idm = buffers["Id"][:T, :T][None, None]
    s = jnp.einsum("bhtd,bhsd->bhts", qh, kh) * (hd ** -0.5)
    s = jnp.where(mc == 0.0, -jnp.inf, s)
    att = jax.nn.softmax(s, axis=-1)
    shaped = params["beta"] * att + params["alpha"] * idm - params["gamma"] * mc
    y = jnp.einsum("bhts,bhsd->bhtd", shaped, vh)
    return y.transpose(0, 2, 1, 3).reshape(B, T, C)


if __name__ == "__main__":
    # Small but lane-aligned demo shapes (C multiple of 128 keeps blocks legal).
    # T=32 with tq=8 exercises the flash kv loop (4 kv blocks) and the causal
    # block skipping, while staying tiny.
    B, T, C, n_head, block_size = 2, 32, 128, 4, 32

    key = jax.random.PRNGKey(0)
    kx, kp = jax.random.split(key)
    x = jax.random.normal(kx, (B, T, C), dtype=jnp.float32)

    fwd = jax.jit(functools.partial(causal_shaped_attention_forward,
                                    n_head=n_head, tq=8))

    # Check both the module's custom init (k-rows zeroed) and a generic init
    # so the score/softmax path is genuinely exercised.
    for custom_init in (True, False):
        params, buffers = make_params_and_buffers(kp, C, n_head, block_size,
                                                  custom_init)
        y = jax.block_until_ready(fwd(x, params))
        y_ref = reference_forward(x, params, buffers, n_head)
        assert y.shape == (B, T, C)
        # f32 throughout + exact softmax normalization -> tight tolerance.
        assert jnp.allclose(y, y_ref, atol=1e-4, rtol=1e-4), "mismatch vs reference"

    print("KERNEL_OK")
</pallas_src>

<mosaic_0001>
module attributes {stable_mosaic.version = 11 : i64} {
  func.func @_shaped_attn_kernel(%arg0: i32, %arg1: i32, %arg2: i32, %arg3: memref<3xf32, #tpu.memory_space<smem>>, %arg4: memref<1x8x128xf32, #tpu.memory_space<vmem>>, %arg5: memref<1x8x128xf32, #tpu.memory_space<vmem>>, %arg6: memref<1x8x128xf32, #tpu.memory_space<vmem>>, %arg7: memref<1x8x128xf32, #tpu.memory_space<vmem>>, %arg8: memref<4x8x1xf32, #tpu.memory_space<vmem>>, %arg9: memref<4x8x1xf32, #tpu.memory_space<vmem>>, %arg10: memref<4x8x32xf32, #tpu.memory_space<vmem>>, %arg11: memref<8x128xf32, #tpu.memory_space<vmem>>) attributes {dimension_semantics = [#tpu.dimension_semantics<parallel>, #tpu.dimension_semantics<parallel>, #tpu.dimension_semantics<arbitrary>], iteration_bounds = array<i64: 2, 4, 4>, scalar_prefetch = 0 : i64, scratch_operands = 4 : i64, tpu.core_type = #tpu.core_type<tc>, window_params = [{transform_indices = @transform_0, window_bounds = array<i64: 3>}, {transform_indices = @transform_1, window_bounds = array<i64: 1, 8, 128>}, {transform_indices = @transform_2, window_bounds = array<i64: 1, 8, 128>}, {transform_indices = @transform_3, window_bounds = array<i64: 1, 8, 128>}, {transform_indices = @transform_4, window_bounds = array<i64: 1, 8, 128>}]} {
    %c8_i32 = arith.constant 8 : i32
    %0 = arith.muli %arg1, %c8_i32 : i32
    %1 = tpu.assume_multiple %0, 8 : i32
    %c8_i32_0 = arith.constant 8 : i32
    %2 = arith.muli %arg2, %c8_i32_0 : i32
    %3 = tpu.assume_multiple %2, 8 : i32
    %c0 = arith.constant 0 : index
    %4 = memref.load %arg3[%c0] : memref<3xf32, #tpu.memory_space<smem>>
    %c1 = arith.constant 1 : index
    %5 = memref.load %arg3[%c1] : memref<3xf32, #tpu.memory_space<smem>>
    %c2 = arith.constant 2 : index
    %6 = memref.load %arg3[%c2] : memref<3xf32, #tpu.memory_space<smem>>
    %c0_i32 = arith.constant 0 : i32
    %7 = arith.cmpi eq, %arg2, %c0_i32 : i32
    %8 = arith.extui %7 : i1 to i32
    %c0_i32_1 = arith.constant 0 : i32
    %9 = arith.cmpi ne, %8, %c0_i32_1 : i32
    scf.if %9 {
      %cst = arith.constant 0xFF800000 : f32
      %18 = vector.broadcast %cst : f32 to vector<4x8x1xf32>
      %c0_5 = arith.constant 0 : index
      %c0_6 = arith.constant 0 : index
      %c0_7 = arith.constant 0 : index
      %19 = vector.load %arg8[%c0_5, %c0_6, %c0_7] : memref<4x8x1xf32, #tpu.memory_space<vmem>>, vector<4x8x1xf32>
      tpu.vector_store %arg8[%c0_5, %c0_6, %c0_7], %18 {strides = array<i32>} : memref<4x8x1xf32, #tpu.memory_space<vmem>>, vector<4x8x1xf32>,
      %cst_8 = arith.constant 0.000000e+00 : f32
      %20 = vector.broadcast %cst_8 : f32 to vector<4x8x1xf32>
      %c0_9 = arith.constant 0 : index
      %c0_10 = arith.constant 0 : index
      %c0_11 = arith.constant 0 : index
      %21 = vector.load %arg9[%c0_9, %c0_10, %c0_11] : memref<4x8x1xf32, #tpu.memory_space<vmem>>, vector<4x8x1xf32>
      tpu.vector_store %arg9[%c0_9, %c0_10, %c0_11], %20 {strides = array<i32>} : memref<4x8x1xf32, #tpu.memory_space<vmem>>, vector<4x8x1xf32>,
      %cst_12 = arith.constant 0.000000e+00 : f32
      %22 = vector.broadcast %cst_12 : f32 to vector<4x8x32xf32>
      %c0_13 = arith.constant 0 : index
      %c0_14 = arith.constant 0 : index
      %c0_15 = arith.constant 0 : index
      %23 = vector.load %arg10[%c0_13, %c0_14, %c0_15] : memref<4x8x32xf32, #tpu.memory_space<vmem>>, vector<4x8x32xf32>
      tpu.vector_store %arg10[%c0_13, %c0_14, %c0_15], %22 {strides = array<i32>} : memref<4x8x32xf32, #tpu.memory_space<vmem>>, vector<4x8x32xf32>,
      %cst_16 = arith.constant 0.000000e+00 : f32
      %24 = vector.broadcast %cst_16 : f32 to vector<8x128xf32>
      %c0_17 = arith.constant 0 : index
      %c0_18 = arith.constant 0 : index
      %25 = vector.load %arg11[%c0_17, %c0_18] : memref<8x128xf32, #tpu.memory_space<vmem>>, vector<8x128xf32>
      tpu.vector_store %arg11[%c0_17, %c0_18], %24 {strides = array<i32>} : memref<8x128xf32, #tpu.memory_space<vmem>>, vector<8x128xf32>,
    } else {
    }
    %c8_i32_2 = arith.constant 8 : i32
    %10 = arith.addi %1, %c8_i32_2 : i32
    %c1_i32 = arith.constant 1 : i32
    %11 = arith.subi %10, %c1_i32 : i32
    %12 = arith.cmpi sle, %3, %11 : i32
    %13 = arith.extui %12 : i1 to i32
    %c0_i32_3 = arith.constant 0 : i32
    %14 = arith.cmpi ne, %13, %c0_i32_3 : i32
    scf.if %14 {
      %18 = tpu.iota {dimensions = array<i32: 0>} : vector<8x1xi32>
      %19 = vector.broadcast %1 : i32 to vector<8x1xi32>
      %20 = arith.addi %19, %18 : vector<8x1xi32>
      %21 = vector.broadcast %3 : i32 to vector<8x1xi32>
      %22 = arith.subi %20, %21 : vector<8x1xi32>
      %23 = tpu.iota {dimensions = array<i32: 1>} : vector<8x8xi32>
      %24 = vector.broadcast %22 : vector<8x1xi32> to vector<8x8xi32>
      %25 = arith.cmpi sle, %23, %24 : vector<8x8xi32>
      %26 = arith.sitofp %20 : vector<8x1xi32> to vector<8x1xf32>
      %cst = arith.constant 1.000000e+00 : f32
      %27 = vector.broadcast %cst : f32 to vector<8x1xf32>
      %28 = arith.addf %26, %27 : vector<8x1xf32>
      %29 = vector.broadcast %6 : f32 to vector<8x1xf32>
      %30 = arith.divf %29, %28 : vector<8x1xf32>
      %31 = vector.broadcast %22 : vector<8x1xi32> to vector<8x8xi32>
      %32 = arith.cmpi eq, %23, %31 : vector<8x8xi32>
      %cst_5 = arith.constant 0.000000e+00 : f32
      %33 = vector.broadcast %4 : f32 to vector<8x8xf32>
      %34 = vector.broadcast %cst_5 : f32 to vector<8x8xf32>
      %35 = arith.select %32, %33, %34 : vector<8x8xi1>, vector<8x8xf32>
      %36 = arith.extui %25 : vector<8x8xi1> to vector<8x8xi32>
      %37 = arith.sitofp %36 : vector<8x8xi32> to vector<8x8xf32>
      %38 = vector.broadcast %30 : vector<8x1xf32> to vector<8x8xf32>
      %39 = arith.mulf %37, %38 : vector<8x8xf32>
      %40 = arith.subf %35, %39 : vector<8x8xf32>
      %c0_6 = arith.constant 0 : index
      %c0_7 = arith.constant 0 : index
      %c0_8 = arith.constant 0 : index
      %41 = vector.load %arg6[%c0_6, %c0_7, %c0_8] : memref<1x8x128xf32, #tpu.memory_space<vmem>>, vector<1x8x128xf32>
      %42 = vector.shape_cast %41 : vector<1x8x128xf32> to vector<8x128xf32>
      %c0_9 = arith.constant 0 : index
      %c0_10 = arith.constant 0 : index
      %43 = vector.load %arg11[%c0_9, %c0_10] : memref<8x128xf32, #tpu.memory_space<vmem>>, vector<8x128xf32>
      %cst_11 = arith.constant dense<0.000000e+00> : vector<8x128xf32>
      %44 = tpu.matmul %40, %42, %cst_11 {dimension_numbers = #tpu.dot_dimension_numbers<[1], [0], [0], [1], [0, 0, 1, 1], [], []>} : vector<8x8xf32>, vector<8x128xf32>, vector<8x128xf32> -> vector<8x128xf32>
      %45 = arith.addf %43, %44 : vector<8x128xf32>
      %c0_12 = arith.constant 0 : index
      %c0_13 = arith.constant 0 : index
      %46 = vector.load %arg11[%c0_12, %c0_13] : memref<8x128xf32, #tpu.memory_space<vmem>>, vector<8x128xf32>
      tpu.vector_store %arg11[%c0_12, %c0_13], %45 {strides = array<i32>} : memref<8x128xf32, #tpu.memory_space<vmem>>, vector<8x128xf32>,
      %c0_14 = arith.constant 0 : index
      %c0_15 = arith.constant 0 : index
      %c0_16 = arith.constant 0 : index
      %47 = vector.load %arg4[%c0_14, %c0_15, %c0_16] : memref<1x8x128xf32, #tpu.memory_space<vmem>>, vector<1x8x32xf32>
      %48 = vector.shape_cast %47 : vector<1x8x32xf32> to vector<8x32xf32>
      %c0_17 = arith.constant 0 : index
      %c0_18 = arith.constant 0 : index
      %c0_19 = arith.constant 0 : index
      %49 = vector.load %arg5[%c0_17, %c0_18, %c0_19] : memref<1x8x128xf32, #tpu.memory_space<vmem>>, vector<1x8x32xf32>
      %50 = vector.shape_cast %49 : vector<1x8x32xf32> to vector<8x32xf32>
      %c0_20 = arith.constant 0 : index
      %c0_21 = arith.constant 0 : index
      %c0_22 = arith.constant 0 : index
      %51 = vector.load %arg6[%c0_20, %c0_21, %c0_22] : memref<1x8x128xf32, #tpu.memory_space<vmem>>, vector<1x8x32xf32>
      %52 = vector.shape_cast %51 : vector<1x8x32xf32> to vector<8x32xf32>
      %cst_23 = arith.constant dense<0.000000e+00> : vector<8x8xf32>
      %53 = tpu.matmul %48, %50, %cst_23 {dimension_numbers = #tpu.dot_dimension_numbers<[1], [1], [0], [0], [0, 0, 1, 0], [], []>} : vector<8x32xf32>, vector<8x32xf32>, vector<8x8xf32> -> vector<8x8xf32>
      %cst_24 = arith.constant 0xFF800000 : f32
      %54 = vector.broadcast %cst_24 : f32 to vector<8x8xf32>
      %55 = arith.select %25, %53, %54 : vector<8x8xi1>, vector<8x8xf32>
      %c0_25 = arith.constant 0 : index
      %c0_26 = arith.constant 0 : index
      %c0_27 = arith.constant 0 : index
      %56 = vector.load %arg8[%c0_25, %c0_26, %c0_27] : memref<4x8x1xf32, #tpu.memory_space<vmem>>, vector<1x8x1xf32>
      %57 = vector.shape_cast %56 : vector<1x8x1xf32> to vector<8x1xf32>
      %cst_28 = arith.constant dense<0xFF800000> : vector<8xf32>
      %58 = vector.multi_reduction <maximumf>, %55, %cst_28 [1] : vector<8x8xf32> to vector<8xf32>
      %59 = vector.shape_cast %58 : vector<8xf32> to vector<8x1xf32>
      %60 = arith.maximumf %57, %59 : vector<8x1xf32>
      %61 = arith.subf %57, %60 : vector<8x1xf32>
      %62 = math.exp %61 : vector<8x1xf32>
      %63 = vector.broadcast %60 : vector<8x1xf32> to vector<8x8xf32>
      %64 = arith.subf %55, %63 : vector<8x8xf32>
      %65 = math.exp %64 : vector<8x8xf32>
      %c0_29 = arith.constant 0 : index
      %c0_30 = arith.constant 0 : index
      %c0_31 = arith.constant 0 : index
      %66 = vector.load %arg9[%c0_29, %c0_30, %c0_31] : memref<4x8x1xf32, #tpu.memory_space<vmem>>, vector<1x8x1xf32>
      %67 = vector.shape_cast %66 : vector<1x8x1xf32> to vector<8x1xf32>
      %68 = arith.mulf %62, %67 : vector<8x1xf32>
      %cst_32 = arith.constant dense<0.000000e+00> : vector<8xf32>
      %69 = vector.multi_reduction <add>, %65, %cst_32 [1] : vector<8x8xf32> to vector<8xf32>
      %70 = vector.shape_cast %69 : vector<8xf32> to vector<8x1xf32>
      %71 = arith.addf %68, %70 : vector<8x1xf32>
      %c0_33 = arith.constant 0 : index
      %c0_34 = arith.constant 0 : index
      %c0_35 = arith.constant 0 : index
      %72 = vector.load %arg9[%c0_33, %c0_34, %c0_35] : memref<4x8x1xf32, #tpu.memory_space<vmem>>, vector<1x8x1xf32>
      %73 = vector.shape_cast %72 : vector<1x8x1xf32> to vector<8x1xf32>
      %74 = vector.shape_cast %71 : vector<8x1xf32> to vector<1x8x1xf32>
      tpu.vector_store %arg9[%c0_33, %c0_34, %c0_35], %74 {strides = array<i32>} : memref<4x8x1xf32, #tpu.memory_space<vmem>>, vector<1x8x1xf32>,
      %c0_36 = arith.constant 0 : index
      %c0_37 = arith.constant 0 : index
      %c0_38 = arith.constant 0 : index
      %75 = vector.load %arg10[%c0_36, %c0_37, %c0_38] : memref<4x8x32xf32, #tpu.memory_space<vmem>>, vector<1x8x32xf32>
      %76 = vector.shape_cast %75 : vector<1x8x32xf32> to vector<8x32xf32>
      %77 = vector.broadcast %62 : vector<8x1xf32> to vector<8x32xf32>
      %78 = arith.mulf %77, %76 : vector<8x32xf32>
      %cst_39 = arith.constant dense<0.000000e+00> : vector<8x32xf32>
      %79 = tpu.matmul %65, %52, %cst_39 {dimension_numbers = #tpu.dot_dimension_numbers<[1], [0], [0], [1], [0, 0, 1, 1], [], []>} : vector<8x8xf32>, vector<8x32xf32>, vector<8x32xf32> -> vector<8x32xf32>
      %80 = arith.addf %78, %79 : vector<8x32xf32>
      %c0_40 = arith.constant 0 : index
      %c0_41 = arith.constant 0 : index
      %c0_42 = arith.constant 0 : index
      %81 = vector.load %arg10[%c0_40, %c0_41, %c0_42] : memref<4x8x32xf32, #tpu.memory_space<vmem>>, vector<1x8x32xf32>
      %82 = vector.shape_cast %81 : vector<1x8x32xf32> to vector<8x32xf32>
      %83 = vector.shape_cast %80 : vector<8x32xf32> to vector<1x8x32xf32>
      tpu.vector_store %arg10[%c0_40, %c0_41, %c0_42], %83 {strides = array<i32>} : memref<4x8x32xf32, #tpu.memory_space<vmem>>, vector<1x8x32xf32>,
      %c0_43 = arith.constant 0 : index
      %c0_44 = arith.constant 0 : index
      %c0_45 = arith.constant 0 : index
      %84 = vector.load %arg8[%c0_43, %c0_44, %c0_45] : memref<4x8x1xf32, #tpu.memory_space<vmem>>, vector<1x8x1xf32>
      %85 = vector.shape_cast %84 : vector<1x8x1xf32> to vector<8x1xf32>
      %86 = vector.shape_cast %60 : vector<8x1xf32> to vector<1x8x1xf32>
      tpu.vector_store %arg8[%c0_43, %c0_44, %c0_45], %86 {strides = array<i32>} : memref<4x8x1xf32, #tpu.memory_space<vmem>>, vector<1x8x1xf32>,
      %c0_46 = arith.constant 0 : index
      %c0_47 = arith.constant 0 : index
      %c32 = arith.constant 32 : index
      %87 = vector.load %arg4[%c0_46, %c0_47, %c32] : memref<1x8x128xf32, #tpu.memory_space<vmem>>, vector<1x8x32xf32>
      %88 = vector.shape_cast %87 : vector<1x8x32xf32> to vector<8x32xf32>
      %c0_48 = arith.constant 0 : index
      %c0_49 = arith.constant 0 : index
      %c32_50 = arith.constant 32 : index
      %89 = vector.load %arg5[%c0_48, %c0_49, %c32_50] : memref<1x8x128xf32, #tpu.memory_space<vmem>>, vector<1x8x32xf32>
      %90 = vector.shape_cast %89 : vector<1x8x32xf32> to vector<8x32xf32>
      %c0_51 = arith.constant 0 : index
      %c0_52 = arith.constant 0 : index
      %c32_53 = arith.constant 32 : index
      %91 = vector.load %arg6[%c0_51, %c0_52, %c32_53] : memref<1x8x128xf32, #tpu.memory_space<vmem>>, vector<1x8x32xf32>
      %92 = vector.shape_cast %91 : vector<1x8x32xf32> to vector<8x32xf32>
      %cst_54 = arith.constant dense<0.000000e+00> : vector<8x8xf32>
      %93 = tpu.matmul %88, %90, %cst_54 {dimension_numbers = #tpu.dot_dimension_numbers<[1], [1], [0], [0], [0, 0, 1, 0], [], []>} : vector<8x32xf32>, vector<8x32xf32>, vector<8x8xf32> -> vector<8x8xf32>
      %cst_55 = arith.constant 0xFF800000 : f32
      %94 = vector.broadcast %cst_55 : f32 to vector<8x8xf32>
      %95 = arith.select %25, %93, %94 : vector<8x8xi1>, vector<8x8xf32>
      %c1_56 = arith.constant 1 : index
      %c0_57 = arith.constant 0 : index
      %c0_58 = arith.constant 0 : index
      %96 = vector.load %arg8[%c1_56, %c0_57, %c0_58] : memref<4x8x1xf32, #tpu.memory_space<vmem>>, vector<1x8x1xf32>
      %97 = vector.shape_cast %96 : vector<1x8x1xf32> to vector<8x1xf32>
      %cst_59 = arith.constant dense<0xFF800000> : vector<8xf32>
      %98 = vector.multi_reduction <maximumf>, %95, %cst_59 [1] : vector<8x8xf32> to vector<8xf32>
      %99 = vector.shape_cast %98 : vector<8xf32> to vector<8x1xf32>
      %100 = arith.maximumf %97, %99 : vector<8x1xf32>
      %101 = arith.subf %97, %100 : vector<8x1xf32>
      %102 = math.exp %101 : vector<8x1xf32>
      %103 = vector.broadcast %100 : vector<8x1xf32> to vector<8x8xf32>
      %104 = arith.subf %95, %103 : vector<8x8xf32>
      %105 = math.exp %104 : vector<8x8xf32>
      %c1_60 = arith.constant 1 : index
      %c0_61 = arith.constant 0 : index
      %c0_62 = arith.constant 0 : index
      %106 = vector.load %arg9[%c1_60, %c0_61, %c0_62] : memref<4x8x1xf32, #tpu.memory_space<vmem>>, vector<1x8x1xf32>
      %107 = vector.shape_cast %106 : vector<1x8x1xf32> to vector<8x1xf32>
      %108 = arith.mulf %102, %107 : vector<8x1xf32>
      %cst_63 = arith.constant dense<0.000000e+00> : vector<8xf32>
      %109 = vector.multi_reduction <add>, %105, %cst_63 [1] : vector<8x8xf32> to vector<8xf32>
      %110 = vector.shape_cast %109 : vector<8xf32> to vector<8x1xf32>
      %111 = arith.addf %108, %110 : vector<8x1xf32>
      %c1_64 = arith.constant 1 : index
      %c0_65 = arith.constant 0 : index
      %c0_66 = arith.constant 0 : index
      %112 = vector.load %arg9[%c1_64, %c0_65, %c0_66] : memref<4x8x1xf32, #tpu.memory_space<vmem>>, vector<1x8x1xf32>
      %113 = vector.shape_cast %112 : vector<1x8x1xf32> to vector<8x1xf32>
      %114 = vector.shape_cast %111 : vector<8x1xf32> to vector<1x8x1xf32>
      tpu.vector_store %arg9[%c1_64, %c0_65, %c0_66], %114 {strides = array<i32>} : memref<4x8x1xf32, #tpu.memory_space<vmem>>, vector<1x8x1xf32>,
      %c1_67 = arith.constant 1 : index
      %c0_68 = arith.constant 0 : index
      %c0_69 = arith.constant 0 : index
      %115 = vector.load %arg10[%c1_67, %c0_68, %c0_69] : memref<4x8x32xf32, #tpu.memory_space<vmem>>, vector<1x8x32xf32>
      %116 = vector.shape_cast %115 : vector<1x8x32xf32> to vector<8x32xf32>
      %117 = vector.broadcast %102 : vector<8x1xf32> to vector<8x32xf32>
      %118 = arith.mulf %117, %116 : vector<8x32xf32>
      %cst_70 = arith.constant dense<0.000000e+00> : vector<8x32xf32>
      %119 = tpu.matmul %105, %92, %cst_70 {dimension_numbers = #tpu.dot_dimension_numbers<[1], [0], [0], [1], [0, 0, 1, 1], [], []>} : vector<8x8xf32>, vector<8x32xf32>, vector<8x32xf32> -> vector<8x32xf32>
      %120 = arith.addf %118, %119 : vector<8x32xf32>
      %c1_71 = arith.constant 1 : index
      %c0_72 = arith.constant 0 : index
      %c0_73 = arith.constant 0 : index
      %121 = vector.load %arg10[%c1_71, %c0_72, %c0_73] : memref<4x8x32xf32, #tpu.memory_space<vmem>>, vector<1x8x32xf32>
      %122 = vector.shape_cast %121 : vector<1x8x32xf32> to vector<8x32xf32>
      %123 = vector.shape_cast %120 : vector<8x32xf32> to vector<1x8x32xf32>
      tpu.vector_store %arg10[%c1_71, %c0_72, %c0_73], %123 {strides = array<i32>} : memref<4x8x32xf32, #tpu.memory_space<vmem>>, vector<1x8x32xf32>,
      %c1_74 = arith.constant 1 : index
      %c0_75 = arith.constant 0 : index
      %c0_76 = arith.constant 0 : index
      %124 = vector.load %arg8[%c1_74, %c0_75, %c0_76] : memref<4x8x1xf32, #tpu.memory_space<vmem>>, vector<1x8x1xf32>
      %125 = vector.shape_cast %124 : vector<1x8x1xf32> to vector<8x1xf32>
      %126 = vector.shape_cast %100 : vector<8x1xf32> to vector<1x8x1xf32>
      tpu.vector_store %arg8[%c1_74, %c0_75, %c0_76], %126 {strides = array<i32>} : memref<4x8x1xf32, #tpu.memory_space<vmem>>, vector<1x8x1xf32>,
      %c0_77 = arith.constant 0 : index
      %c0_78 = arith.constant 0 : index
      %c64 = arith.constant 64 : index
      %127 = vector.load %arg4[%c0_77, %c0_78, %c64] : memref<1x8x128xf32, #tpu.memory_space<vmem>>, vector<1x8x32xf32>
      %128 = vector.shape_cast %127 : vector<1x8x32xf32> to vector<8x32xf32>
      %c0_79 = arith.constant 0 : index
      %c0_80 = arith.constant 0 : index
      %c64_81 = arith.constant 64 : index
      %129 = vector.load %arg5[%c0_79, %c0_80, %c64_81] : memref<1x8x128xf32, #tpu.memory_space<vmem>>, vector<1x8x32xf32>
      %130 = vector.shape_cast %129 : vector<1x8x32xf32> to vector<8x32xf32>
      %c0_82 = arith.constant 0 : index
      %c0_83 = arith.constant 0 : index
      %c64_84 = arith.constant 64 : index
      %131 = vector.load %arg6[%c0_82, %c0_83, %c64_84] : memref<1x8x128xf32, #tpu.memory_space<vmem>>, vector<1x8x32xf32>
      %132 = vector.shape_cast %131 : vector<1x8x32xf32> to vector<8x32xf32>
      %cst_85 = arith.constant dense<0.000000e+00> : vector<8x8xf32>
      %133 = tpu.matmul %128, %130, %cst_85 {dimension_numbers = #tpu.dot_dimension_numbers<[1], [1], [0], [0], [0, 0, 1, 0], [], []>} : vector<8x32xf32>, vector<8x32xf32>, vector<8x8xf32> -> vector<8x8xf32>
      %cst_86 = arith.constant 0xFF800000 : f32
      %134 = vector.broadcast %cst_86 : f32 to vector<8x8xf32>
      %135 = arith.select %25, %133, %134 : vector<8x8xi1>, vector<8x8xf32>
      %c2_87 = arith.constant 2 : index
      %c0_88 = arith.constant 0 : index
      %c0_89 = arith.constant 0 : index
      %136 = vector.load %arg8[%c2_87, %c0_88, %c0_89] : memref<4x8x1xf32, #tpu.memory_space<vmem>>, vector<1x8x1xf32>
      %137 = vector.shape_cast %136 : vector<1x8x1xf32> to vector<8x1xf32>
      %cst_90 = arith.constant dense<0xFF800000> : vector<8xf32>
      %138 = vector.multi_reduction <maximumf>, %135, %cst_90 [1] : vector<8x8xf32> to vector<8xf32>
      %139 = vector.shape_cast %138 : vector<8xf32> to vector<8x1xf32>
      %140 = arith.maximumf %137, %139 : vector<8x1xf32>
      %141 = arith.subf %137, %140 : vector<8x1xf32>
      %142 = math.exp %141 : vector<8x1xf32>
      %143 = vector.broadcast %140 : vector<8x1xf32> to vector<8x8xf32>
      %144 = arith.subf %135, %143 : vector<8x8xf32>
      %145 = math.exp %144 : vector<8x8xf32>
      %c2_91 = arith.constant 2 : index
      %c0_92 = arith.constant 0 : index
      %c0_93 = arith.constant 0 : index
      %146 = vector.load %arg9[%c2_91, %c0_92, %c0_93] : memref<4x8x1xf32, #tpu.memory_space<vmem>>, vector<1x8x1xf32>
      %147 = vector.shape_cast %146 : vector<1x8x1xf32> to vector<8x1xf32>
      %148 = arith.mulf %142, %147 : vector<8x1xf32>
      %cst_94 = arith.constant dense<0.000000e+00> : vector<8xf32>
      %149 = vector.multi_reduction <add>, %145, %cst_94 [1] : vector<8x8xf32> to vector<8xf32>
      %150 = vector.shape_cast %149 : vector<8xf32> to vector<8x1xf32>
      %151 = arith.addf %148, %150 : vector<8x1xf32>
      %c2_95 = arith.constant 2 : index
      %c0_96 = arith.constant 0 : index
      %c0_97 = arith.constant 0 : index
      %152 = vector.load %arg9[%c2_95, %c0_96, %c0_97] : memref<4x8x1xf32, #tpu.memory_space<vmem>>, vector<1x8x1xf32>
      %153 = vector.shape_cast %152 : vector<1x8x1xf32> to vector<8x1xf32>
      %154 = vector.shape_cast %151 : vector<8x1xf32> to vector<1x8x1xf32>
      tpu.vector_store %arg9[%c2_95, %c0_96, %c0_97], %154 {strides = array<i32>} : memref<4x8x1xf32, #tpu.memory_space<vmem>>, vector<1x8x1xf32>,
      %c2_98 = arith.constant 2 : index
      %c0_99 = arith.constant 0 : index
      %c0_100 = arith.constant 0 : index
      %155 = vector.load %arg10[%c2_98, %c0_99, %c0_100] : memref<4x8x32xf32, #tpu.memory_space<vmem>>, vector<1x8x32xf32>
      %156 = vector.shape_cast %155 : vector<1x8x32xf32> to vector<8x32xf32>
      %157 = vector.broadcast %142 : vector<8x1xf32> to vector<8x32xf32>
      %158 = arith.mulf %157, %156 : vector<8x32xf32>
      %cst_101 = arith.constant dense<0.000000e+00> : vector<8x32xf32>
      %159 = tpu.matmul %145, %132, %cst_101 {dimension_numbers = #tpu.dot_dimension_numbers<[1], [0], [0], [1], [0, 0, 1, 1], [], []>} : vector<8x8xf32>, vector<8x32xf32>, vector<8x32xf32> -> vector<8x32xf32>
      %160 = arith.addf %158, %159 : vector<8x32xf32>
      %c2_102 = arith.constant 2 : index
      %c0_103 = arith.constant 0 : index
      %c0_104 = arith.constant 0 : index
      %161 = vector.load %arg10[%c2_102, %c0_103, %c0_104] : memref<4x8x32xf32, #tpu.memory_space<vmem>>, vector<1x8x32xf32>
      %162 = vector.shape_cast %161 : vector<1x8x32xf32> to vector<8x32xf32>
      %163 = vector.shape_cast %160 : vector<8x32xf32> to vector<1x8x32xf32>
      tpu.vector_store %arg10[%c2_102, %c0_103, %c0_104], %163 {strides = array<i32>} : memref<4x8x32xf32, #tpu.memory_space<vmem>>, vector<1x8x32xf32>,
      %c2_105 = arith.constant 2 : index
      %c0_106 = arith.constant 0 : index
      %c0_107 = arith.constant 0 : index
      %164 = vector.load %arg8[%c2_105, %c0_106, %c0_107] : memref<4x8x1xf32, #tpu.memory_space<vmem>>, vector<1x8x1xf32>
      %165 = vector.shape_cast %164 : vector<1x8x1xf32> to vector<8x1xf32>
      %166 = vector.shape_cast %140 : vector<8x1xf32> to vector<1x8x1xf32>
      tpu.vector_store %arg8[%c2_105, %c0_106, %c0_107], %166 {strides = array<i32>} : memref<4x8x1xf32, #tpu.memory_space<vmem>>, vector<1x8x1xf32>,
      %c0_108 = arith.constant 0 : index
      %c0_109 = arith.constant 0 : index
      %c96 = arith.constant 96 : index
      %167 = vector.load %arg4[%c0_108, %c0_109, %c96] : memref<1x8x128xf32, #tpu.memory_space<vmem>>, vector<1x8x32xf32>
      %168 = vector.shape_cast %167 : vector<1x8x32xf32> to vector<8x32xf32>
      %c0_110 = arith.constant 0 : index
      %c0_111 = arith.constant 0 : index
      %c96_112 = arith.constant 96 : index
      %169 = vector.load %arg5[%c0_110, %c0_111, %c96_112] : memref<1x8x128xf32, #tpu.memory_space<vmem>>, vector<1x8x32xf32>
      %170 = vector.shape_cast %169 : vector<1x8x32xf32> to vector<8x32xf32>
      %c0_113 = arith.constant 0 : index
      %c0_114 = arith.constant 0 : index
      %c96_115 = arith.constant 96 : index
      %171 = vector.load %arg6[%c0_113, %c0_114, %c96_115] : memref<1x8x128xf32, #tpu.memory_space<vmem>>, vector<1x8x32xf32>
      %172 = vector.shape_cast %171 : vector<1x8x32xf32> to vector<8x32xf32>
      %cst_116 = arith.constant dense<0.000000e+00> : vector<8x8xf32>
      %173 = tpu.matmul %168, %170, %cst_116 {dimension_numbers = #tpu.dot_dimension_numbers<[1], [1], [0], [0], [0, 0, 1, 0], [], []>} : vector<8x32xf32>, vector<8x32xf32>, vector<8x8xf32> -> vector<8x8xf32>
      %cst_117 = arith.constant 0xFF800000 : f32
      %174 = vector.broadcast %cst_117 : f32 to vector<8x8xf32>
      %175 = arith.select %25, %173, %174 : vector<8x8xi1>, vector<8x8xf32>
      %c3 = arith.constant 3 : index
      %c0_118 = arith.constant 0 : index
      %c0_119 = arith.constant 0 : index
      %176 = vector.load %arg8[%c3, %c0_118, %c0_119] : memref<4x8x1xf32, #tpu.memory_space<vmem>>, vector<1x8x1xf32>
      %177 = vector.shape_cast %176 : vector<1x8x1xf32> to vector<8x1xf32>
      %cst_120 = arith.constant dense<0xFF800000> : vector<8xf32>
      %178 = vector.multi_reduction <maximumf>, %175, %cst_120 [1] : vector<8x8xf32> to vector<8xf32>
      %179 = vector.shape_cast %178 : vector<8xf32> to vector<8x1xf32>
      %180 = arith.maximumf %177, %179 : vector<8x1xf32>
      %181 = arith.subf %177, %180 : vector<8x1xf32>
      %182 = math.exp %181 : vector<8x1xf32>
      %183 = vector.broadcast %180 : vector<8x1xf32> to vector<8x8xf32>
      %184 = arith.subf %175, %183 : vector<8x8xf32>
      %185 = math.exp %184 : vector<8x8xf32>
      %c3_121 = arith.constant 3 : index
      %c0_122 = arith.constant 0 : index
      %c0_123 = arith.constant 0 : index
      %186 = vector.load %arg9[%c3_121, %c0_122, %c0_123] : memref<4x8x1xf32, #tpu.memory_space<vmem>>, vector<1x8x1xf32>
      %187 = vector.shape_cast %186 : vector<1x8x1xf32> to vector<8x1xf32>
      %188 = arith.mulf %182, %187 : vector<8x1xf32>
      %cst_124 = arith.constant dense<0.000000e+00> : vector<8xf32>
      %189 = vector.multi_reduction <add>, %185, %cst_124 [1] : vector<8x8xf32> to vector<8xf32>
      %190 = vector.shape_cast %189 : vector<8xf32> to vector<8x1xf32>
      %191 = arith.addf %188, %190 : vector<8x1xf32>
      %c3_125 = arith.constant 3 : index
      %c0_126 = arith.constant 0 : index
      %c0_127 = arith.constant 0 : index
      %192 = vector.load %arg9[%c3_125, %c0_126, %c0_127] : memref<4x8x1xf32, #tpu.memory_space<vmem>>, vector<1x8x1xf32>
      %193 = vector.shape_cast %192 : vector<1x8x1xf32> to vector<8x1xf32>
      %194 = vector.shape_cast %191 : vector<8x1xf32> to vector<1x8x1xf32>
      tpu.vector_store %arg9[%c3_125, %c0_126, %c0_127], %194 {strides = array<i32>} : memref<4x8x1xf32, #tpu.memory_space<vmem>>, vector<1x8x1xf32>,
      %c3_128 = arith.constant 3 : index
      %c0_129 = arith.constant 0 : index
      %c0_130 = arith.constant 0 : index
      %195 = vector.load %arg10[%c3_128, %c0_129, %c0_130] : memref<4x8x32xf32, #tpu.memory_space<vmem>>, vector<1x8x32xf32>
      %196 = vector.shape_cast %195 : vector<1x8x32xf32> to vector<8x32xf32>
      %197 = vector.broadcast %182 : vector<8x1xf32> to vector<8x32xf32>
      %198 = arith.mulf %197, %196 : vector<8x32xf32>
      %cst_131 = arith.constant dense<0.000000e+00> : vector<8x32xf32>
      %199 = tpu.matmul %185, %172, %cst_131 {dimension_numbers = #tpu.dot_dimension_numbers<[1], [0], [0], [1], [0, 0, 1, 1], [], []>} : vector<8x8xf32>, vector<8x32xf32>, vector<8x32xf32> -> vector<8x32xf32>
      %200 = arith.addf %198, %199 : vector<8x32xf32>
      %c3_132 = arith.constant 3 : index
      %c0_133 = arith.constant 0 : index
      %c0_134 = arith.constant 0 : index
      %201 = vector.load %arg10[%c3_132, %c0_133, %c0_134] : memref<4x8x32xf32, #tpu.memory_space<vmem>>, vector<1x8x32xf32>
      %202 = vector.shape_cast %201 : vector<1x8x32xf32> to vector<8x32xf32>
      %203 = vector.shape_cast %200 : vector<8x32xf32> to vector<1x8x32xf32>
      tpu.vector_store %arg10[%c3_132, %c0_133, %c0_134], %203 {strides = array<i32>} : memref<4x8x32xf32, #tpu.memory_space<vmem>>, vector<1x8x32xf32>,
      %c3_135 = arith.constant 3 : index
      %c0_136 = arith.constant 0 : index
      %c0_137 = arith.constant 0 : index
      %204 = vector.load %arg8[%c3_135, %c0_136, %c0_137] : memref<4x8x1xf32, #tpu.memory_space<vmem>>, vector<1x8x1xf32>
      %205 = vector.shape_cast %204 : vector<1x8x1xf32> to vector<8x1xf32>
      %206 = vector.shape_cast %180 : vector<8x1xf32> to vector<1x8x1xf32>
      tpu.vector_store %arg8[%c3_135, %c0_136, %c0_137], %206 {strides = array<i32>} : memref<4x8x1xf32, #tpu.memory_space<vmem>>, vector<1x8x1xf32>,
    } else {
    }
    %c3_i32 = arith.constant 3 : i32
    %15 = arith.cmpi eq, %arg2, %c3_i32 : i32
    %16 = arith.extui %15 : i1 to i32
    %c0_i32_4 = arith.constant 0 : i32
    %17 = arith.cmpi ne, %16, %c0_i32_4 : i32
    scf.if %17 {
      %c0_5 = arith.constant 0 : index
      %c0_6 = arith.constant 0 : index
      %c0_7 = arith.constant 0 : index
      %18 = vector.load %arg9[%c0_5, %c0_6, %c0_7] : memref<4x8x1xf32, #tpu.memory_space<vmem>>, vector<1x8x1xf32>
      %19 = vector.shape_cast %18 : vector<1x8x1xf32> to vector<8x1xf32>
      %20 = vector.broadcast %5 : f32 to vector<8x1xf32>
      %21 = arith.divf %20, %19 : vector<8x1xf32>
      %c0_8 = arith.constant 0 : index
      %c0_9 = arith.constant 0 : index
      %c0_10 = arith.constant 0 : index
      %22 = vector.load %arg10[%c0_8, %c0_9, %c0_10] : memref<4x8x32xf32, #tpu.memory_space<vmem>>, vector<1x8x32xf32>
      %23 = vector.shape_cast %22 : vector<1x8x32xf32> to vector<8x32xf32>
      %24 = vector.broadcast %21 : vector<8x1xf32> to vector<8x32xf32>
      %25 = arith.mulf %23, %24 : vector<8x32xf32>
      %c1_11 = arith.constant 1 : index
      %c0_12 = arith.constant 0 : index
      %c0_13 = arith.constant 0 : index
      %26 = vector.load %arg9[%c1_11, %c0_12, %c0_13] : memref<4x8x1xf32, #tpu.memory_space<vmem>>, vector<1x8x1xf32>
      %27 = vector.shape_cast %26 : vector<1x8x1xf32> to vector<8x1xf32>
      %28 = vector.broadcast %5 : f32 to vector<8x1xf32>
      %29 = arith.divf %28, %27 : vector<8x1xf32>
      %c1_14 = arith.constant 1 : index
      %c0_15 = arith.constant 0 : index
      %c0_16 = arith.constant 0 : index
      %30 = vector.load %arg10[%c1_14, %c0_15, %c0_16] : memref<4x8x32xf32, #tpu.memory_space<vmem>>, vector<1x8x32xf32>
      %31 = vector.shape_cast %30 : vector<1x8x32xf32> to vector<8x32xf32>
      %32 = vector.broadcast %29 : vector<8x1xf32> to vector<8x32xf32>
      %33 = arith.mulf %31, %32 : vector<8x32xf32>
      %c2_17 = arith.constant 2 : index
      %c0_18 = arith.constant 0 : index
      %c0_19 = arith.constant 0 : index
      %34 = vector.load %arg9[%c2_17, %c0_18, %c0_19] : memref<4x8x1xf32, #tpu.memory_space<vmem>>, vector<1x8x1xf32>
      %35 = vector.shape_cast %34 : vector<1x8x1xf32> to vector<8x1xf32>
      %36 = vector.broadcast %5 : f32 to vector<8x1xf32>
      %37 = arith.divf %36, %35 : vector<8x1xf32>
      %c2_20 = arith.constant 2 : index
      %c0_21 = arith.constant 0 : index
      %c0_22 = arith.constant 0 : index
      %38 = vector.load %arg10[%c2_20, %c0_21, %c0_22] : memref<4x8x32xf32, #tpu.memory_space<vmem>>, vector<1x8x32xf32>
      %39 = vector.shape_cast %38 : vector<1x8x32xf32> to vector<8x32xf32>
      %40 = vector.broadcast %37 : vector<8x1xf32> to vector<8x32xf32>
      %41 = arith.mulf %39, %40 : vector<8x32xf32>
      %c3 = arith.constant 3 : index
      %c0_23 = arith.constant 0 : index
      %c0_24 = arith.constant 0 : index
      %42 = vector.load %arg9[%c3, %c0_23, %c0_24] : memref<4x8x1xf32, #tpu.memory_space<vmem>>, vector<1x8x1xf32>
      %43 = vector.shape_cast %42 : vector<1x8x1xf32> to vector<8x1xf32>
      %44 = vector.broadcast %5 : f32 to vector<8x1xf32>
      %45 = arith.divf %44, %43 : vector<8x1xf32>
      %c3_25 = arith.constant 3 : index
      %c0_26 = arith.constant 0 : index
      %c0_27 = arith.constant 0 : index
      %46 = vector.load %arg10[%c3_25, %c0_26, %c0_27] : memref<4x8x32xf32, #tpu.memory_space<vmem>>, vector<1x8x32xf32>
      %47 = vector.shape_cast %46 : vector<1x8x32xf32> to vector<8x32xf32>
      %48 = vector.broadcast %45 : vector<8x1xf32> to vector<8x32xf32>
      %49 = arith.mulf %47, %48 : vector<8x32xf32>
      %50 = tpu.concatenate %25, %33, %41, %49 in 1 : vector<8x32xf32>, vector<8x32xf32>, vector<8x32xf32>, vector<8x32xf32> -> vector<8x128xf32>
      %c0_28 = arith.constant 0 : index
      %c0_29 = arith.constant 0 : index
      %51 = vector.load %arg11[%c0_28, %c0_29] : memref<8x128xf32, #tpu.memory_space<vmem>>, vector<8x128xf32>
      %52 = arith.addf %50, %51 : vector<8x128xf32>
      %c0_30 = arith.constant 0 : index
      %c0_31 = arith.constant 0 : index
      %c0_32 = arith.constant 0 : index
      %53 = vector.load %arg7[%c0_30, %c0_31, %c0_32] : memref<1x8x128xf32, #tpu.memory_space<vmem>>, vector<1x8x128xf32>
      %54 = vector.shape_cast %53 : vector<1x8x128xf32> to vector<8x128xf32>
      %55 = vector.shape_cast %52 : vector<8x128xf32> to vector<1x8x128xf32>
      tpu.vector_store %arg7[%c0_30, %c0_31, %c0_32], %55 {strides = array<i32>} : memref<1x8x128xf32, #tpu.memory_space<vmem>>, vector<1x8x128xf32>,
    } else {
    }
    return
  }
  func.func @transform_0(%arg0: i32, %arg1: i32, %arg2: i32) -> i32 {
    %c0_i32 = arith.constant 0 : i32
    %c0_i32_0 = arith.constant 0 : i32
    return %c0_i32 : i32
  }
  func.func @transform_1(%arg0: i32, %arg1: i32, %arg2: i32) -> (i32, i32, i32) {
    %c0_i32 = arith.constant 0 : i32
    %c0_i32_0 = arith.constant 0 : i32
    return %arg0, %arg1, %c0_i32 : i32, i32, i32
  }
  func.func @transform_2(%arg0: i32, %arg1: i32, %arg2: i32) -> (i32, i32, i32) {
    %c1_i32 = arith.constant 1 : i32
    %c0_i32 = arith.constant 0 : i32
    return %arg0, %arg2, %c1_i32 : i32, i32, i32
  }
  func.func @transform_3(%arg0: i32, %arg1: i32, %arg2: i32) -> (i32, i32, i32) {
    %c0_i32 = arith.constant 0 : i32
    %c0_i32_0 = arith.constant 0 : i32
    return %arg0, %arg2, %c0_i32 : i32, i32, i32
  }
  func.func @transform_4(%arg0: i32, %arg1: i32, %arg2: i32) -> (i32, i32, i32) {
    %c0_i32 = arith.constant 0 : i32
    %c0_i32_0 = arith.constant 0 : i32
    return %arg0, %arg1, %c0_i32 : i32, i32, i32
  }
}

module attributes {stable_mosaic.version = 11 : i64} {
  func.func @_proj_kernel(%arg0: i32, %arg1: i32, %arg2: i32, %arg3: memref<64x128xf32, #tpu.memory_space<vmem>>, %arg4: memref<128x256xf32, #tpu.memory_space<vmem>>, %arg5: memref<1x256xf32, #tpu.memory_space<vmem>>, %arg6: memref<64x256xf32, #tpu.memory_space<vmem>>, %arg7: memref<64x256xf32, #tpu.memory_space<vmem>>) attributes {dimension_semantics = [#tpu.dimension_semantics<parallel>, #tpu.dimension_semantics<parallel>, #tpu.dimension_semantics<arbitrary>], iteration_bounds = array<i64: 1, 1, 1>, scalar_prefetch = 0 : i64, scratch_operands = 1 : i64, tpu.core_type = #tpu.core_type<tc>, window_params = [{transform_indices = @transform_0, window_bounds = array<i64: 64, 128>}, {transform_indices = @transform_1, window_bounds = array<i64: 128, 256>}, {transform_indices = @transform_2, window_bounds = array<i64: 1, 256>}, {transform_indices = @transform_3, window_bounds = array<i64: 64, 256>}]} {
    %c0_i32 = arith.constant 0 : i32
    %0 = arith.cmpi eq, %arg2, %c0_i32 : i32
    %1 = arith.extui %0 : i1 to i32
    %c0_i32_0 = arith.constant 0 : i32
    %2 = arith.cmpi ne, %1, %c0_i32_0 : i32
    scf.if %2 {
      %cst_10 = arith.constant 0.000000e+00 : f32
      %12 = vector.broadcast %cst_10 : f32 to vector<64x256xf32>
      %c0_11 = arith.constant 0 : index
      %c0_12 = arith.constant 0 : index
      %13 = vector.load %arg7[%c0_11, %c0_12] : memref<64x256xf32, #tpu.memory_space<vmem>>, vector<64x256xf32>
      tpu.vector_store %arg7[%c0_11, %c0_12], %12 {strides = array<i32>} : memref<64x256xf32, #tpu.memory_space<vmem>>, vector<64x256xf32>,
    } else {
    }
    %c0 = arith.constant 0 : index
    %c0_1 = arith.constant 0 : index
    %3 = vector.load %arg7[%c0, %c0_1] : memref<64x256xf32, #tpu.memory_space<vmem>>, vector<64x256xf32>
    %c0_2 = arith.constant 0 : index
    %c0_3 = arith.constant 0 : index
    %4 = vector.load %arg3[%c0_2, %c0_3] : memref<64x128xf32, #tpu.memory_space<vmem>>, vector<64x128xf32>
    %c0_4 = arith.constant 0 : index
    %c0_5 = arith.constant 0 : index
    %5 = vector.load %arg4[%c0_4, %c0_5] : memref<128x256xf32, #tpu.memory_space<vmem>>, vector<128x256xf32>
    %cst = arith.constant dense<0.000000e+00> : vector<64x256xf32>
    %6 = tpu.matmul %4, %5, %cst {dimension_numbers = #tpu.dot_dimension_numbers<[1], [0], [0], [1], [0, 0, 1, 1], [], []>} : vector<64x128xf32>, vector<128x256xf32>, vector<64x256xf32> -> vector<64x256xf32>
    %7 = arith.addf %3, %6 : vector<64x256xf32>
    %c0_6 = arith.constant 0 : index
    %c0_7 = arith.constant 0 : index
    %8 = vector.load %arg7[%c0_6, %c0_7] : memref<64x256xf32, #tpu.memory_space<vmem>>, vector<64x256xf32>
    tpu.vector_store %arg7[%c0_6, %c0_7], %7 {strides = array<i32>} : memref<64x256xf32, #tpu.memory_space<vmem>>, vector<64x256xf32>,
    %c0_i32_8 = arith.constant 0 : i32
    %9 = arith.cmpi eq, %arg2, %c0_i32_8 : i32
    %10 = arith.extui %9 : i1 to i32
    %c0_i32_9 = arith.constant 0 : i32
    %11 = arith.cmpi ne, %10, %c0_i32_9 : i32
    scf.if %11 {
      %c0_10 = arith.constant 0 : index
      %c0_11 = arith.constant 0 : index
      %12 = vector.load %arg7[%c0_10, %c0_11] : memref<64x256xf32, #tpu.memory_space<vmem>>, vector<64x256xf32>
      %c0_12 = arith.constant 0 : index
      %c0_13 = arith.constant 0 : index
      %13 = vector.load %arg5[%c0_12, %c0_13] : memref<1x256xf32, #tpu.memory_space<vmem>>, vector<1x256xf32>
      %14 = vector.broadcast %13 : vector<1x256xf32> to vector<64x256xf32>
      %15 = arith.addf %12, %14 : vector<64x256xf32>
      %c0_14 = arith.constant 0 : index
      %c0_15 = arith.constant 0 : index
      %16 = vector.load %arg6[%c0_14, %c0_15] : memref<64x256xf32, #tpu.memory_space<vmem>>, vector<64x256xf32>
      tpu.vector_store %arg6[%c0_14, %c0_15], %15 {strides = array<i32>} : memref<64x256xf32, #tpu.memory_space<vmem>>, vector<64x256xf32>,
    } else {
    }
    return
  }
  func.func @transform_0(%arg0: i32, %arg1: i32, %arg2: i32) -> (i32, i32) {
    %c0_i32 = arith.constant 0 : i32
    return %arg0, %arg2 : i32, i32
  }
  func.func @transform_1(%arg0: i32, %arg1: i32, %arg2: i32) -> (i32, i32) {
    %c0_i32 = arith.constant 0 : i32
    return %arg2, %arg1 : i32, i32
  }
  func.func @transform_2(%arg0: i32, %arg1: i32, %arg2: i32) -> (i32, i32) {
    %c0_i32 = arith.constant 0 : i32
    %c0_i32_0 = arith.constant 0 : i32
    return %c0_i32, %arg1 : i32, i32
  }
  func.func @transform_3(%arg0: i32, %arg1: i32, %arg2: i32) -> (i32, i32) {
    %c0_i32 = arith.constant 0 : i32
    return %arg0, %arg1 : i32, i32
  }
}

</mosaic_0001>

<llo_original>
// kernel: causal_shaped_attention_forward.2
$region0: #{causal_shaped_attention_forward.2}
  #allocation0 [shape = 'u32[]', space=smem, size = 0x4, offset = 0x4, fixed_abs, tag = 'smem constant byte address 0x4 - core index']
  #allocation1 [shape = 'u32[144,128]{1,0:T(1,128)}', space=vmem, size = 0x12000, scoped, tag = 'internal scratch']
  #allocation2 [shape = 'f32[64,256]{1,0:T(8,128)}', space=vmem, size = 0x10000, scoped, tag = 'scratch operand']
  %s0 = inlined_call_operand.hbm [shape: f32[64,128], index: 0, kind: input, shape index: {}]
  %s1 = inlined_call_operand.hbm [shape: f32[128,256], index: 1, kind: input, shape index: {}]
  %s2 = inlined_call_operand.vmem [shape: f32[1,256], index: 2, kind: input, shape index: {}]
  %s3 = inlined_call_operand.vmem [shape: f32[64,256], index: 3, kind: output, shape index: {}]
  %s4 = sld [smem:[#allocation0]]
  $region38: #{causal_shaped_attention_forward.2} parent=0
    _
  %s6 = ssub.s32 1, %s4
  %s7 = scalar_select 0, %s6, %s4
  $region1: #{causal_shaped_attention_forward.2} parent=0
    #allocation3 [shape = 'u8[32768]{0}', space=vmem, size = 0x8000, scoped, tag = 'input window, operand 0, single buffered']
    #allocation4 [shape = 's32[1]{0}', space=sflag, size = 0x4, scoped, tag = 'scoped memory for causal_shaped_attention_forward.2']
    #allocation5 [shape = 'u8[131072]{0}', space=vmem, size = 0x20000, scoped, tag = 'input window, operand 1, single buffered']
    #allocation6 [shape = 's32[1]{0}', space=sflag, size = 0x4, scoped, tag = 'scoped memory for causal_shaped_attention_forward.2']
    %8 = vsyncpa [#allocation4], 0
    %9 = vsyncpa [#allocation6], 0
    // Predicated region
    $region2: #{causal_shaped_attention_forward.2} parent=1 // pred_check
      _
    $region3: #{causal_shaped_attention_forward.2} parent=1 // pred_check_branch
      %11 = sbr.rel (0) target = $region5
    $region4: #{causal_shaped_attention_forward.2} parent=1 // pred_region
      %s13 = ssub.s32 1024, 1024
      %14 = vsyncadd [#allocation4], %s13
      %s15 = sshll.u32 [#allocation3], 4
      %s16 = int_to_ptr.vmem [resolvable:$true] %s15
      %21 = dma.hbm_to_vmem [thread:$0]  %s0, 1024, %s16, [#allocation4], 128, 128, 8
    $region5: #{causal_shaped_attention_forward.2} parent=1 // pred_fallthru
      _
    // Predicated region
    $region6: #{causal_shaped_attention_forward.2} parent=1 // pred_check
      _
    $region7: #{causal_shaped_attention_forward.2} parent=1 // pred_check_branch
      %23 = sbr.rel (0) target = $region9
    $region8: #{causal_shaped_attention_forward.2} parent=1 // pred_region
      %s25 = ssub.s32 4096, 4096
      %26 = vsyncadd [#allocation6], %s25
      %s27 = sshll.u32 [#allocation5], 4
      %s28 = int_to_ptr.vmem [resolvable:$true] %s27
      %33 = dma.hbm_to_vmem [thread:$0]  %s1, 4096, %s28, [#allocation6], 256, 256, 16
    $region9: #{causal_shaped_attention_forward.2} parent=1 // pred_fallthru
      _
    // Predicated region
    $region10: #{causal_shaped_attention_forward.2} parent=1 // pred_check
      _
    $region11: #{causal_shaped_attention_forward.2} parent=1 // pred_check_branch
      %35 = sbr.rel (0) target = $region13
    $region12: #{causal_shaped_attention_forward.2} parent=1 // pred_region
      _
    $region13: #{causal_shaped_attention_forward.2} parent=1 // pred_fallthru
      _
    // Predicated region
    $region14: #{causal_shaped_attention_forward.2} parent=1 // pred_check
      _
    $region15: #{causal_shaped_attention_forward.2} parent=1 // pred_check_branch
      %37 = sbr.rel (0) target = $region17
    $region16: #{causal_shaped_attention_forward.2} parent=1 // pred_region
      %38 = dma.done [#allocation4], 1024
    $region17: #{causal_shaped_attention_forward.2} parent=1 // pred_fallthru
      _
    // Predicated region
    $region18: #{causal_shaped_attention_forward.2} parent=1 // pred_check
      _
    $region19: #{causal_shaped_attention_forward.2} parent=1 // pred_check_branch
      %40 = sbr.rel (0) target = $region21
    $region20: #{causal_shaped_attention_forward.2} parent=1 // pred_region
      %41 = dma.done [#allocation6], 4096
    $region21: #{causal_shaped_attention_forward.2} parent=1 // pred_fallthru
      _
    %p42 = scmp.eq.s32.totalorder 0, 0
    // Predicated region
    $region22: #{causal_shaped_attention_forward.2} parent=1 // pred_check
      %p43 = pneg %p42
    $region23: #{causal_shaped_attention_forward.2} parent=1 // pred_check_branch
      %45 = sbr.rel (%p43) target = $region25
    $region24: #{causal_shaped_attention_forward.2} parent=1 // pred_region
      %46 = vst [vmem:[#allocation2] sm:$0xff] 0.0
      %47 = vst [vmem:[#allocation2 + $0x8] sm:$0xff] 0.0
      %48 = vst [vmem:[#allocation2 + $0x10] sm:$0xff] 0.0
      %49 = vst [vmem:[#allocation2 + $0x18] sm:$0xff] 0.0
      %50 = vst [vmem:[#allocation2 + $0x20] sm:$0xff] 0.0
      %51 = vst [vmem:[#allocation2 + $0x28] sm:$0xff] 0.0
      %52 = vst [vmem:[#allocation2 + $0x30] sm:$0xff] 0.0
      %53 = vst [vmem:[#allocation2 + $0x38] sm:$0xff] 0.0
      %54 = vst [vmem:[#allocation2 + $0x40] sm:$0xff] 0.0
      %55 = vst [vmem:[#allocation2 + $0x48] sm:$0xff] 0.0
      %56 = vst [vmem:[#allocation2 + $0x50] sm:$0xff] 0.0
      %57 = vst [vmem:[#allocation2 + $0x58] sm:$0xff] 0.0
      %58 = vst [vmem:[#allocation2 + $0x60] sm:$0xff] 0.0
      %59 = vst [vmem:[#allocation2 + $0x68] sm:$0xff] 0.0
      %60 = vst [vmem:[#allocation2 + $0x70] sm:$0xff] 0.0
      %61 = vst [vmem:[#allocation2 + $0x78] sm:$0xff] 0.0
    $region25: #{causal_shaped_attention_forward.2} parent=1 // pred_fallthru
      _
    %v62 = vld [vmem:[#allocation2] sm:$0xff]
    %v63 = vld [vmem:[#allocation2 + $0x8] sm:$0xff]
    %v64 = vld [vmem:[#allocation2 + $0x10] sm:$0xff]
    %v65 = vld [vmem:[#allocation2 + $0x18] sm:$0xff]
    %v66 = vld [vmem:[#allocation2 + $0x20] sm:$0xff]
    %v67 = vld [vmem:[#allocation2 + $0x28] sm:$0xff]
    %v68 = vld [vmem:[#allocation2 + $0x30] sm:$0xff]
    %v69 = vld [vmem:[#allocation2 + $0x38] sm:$0xff]
    %v70 = vld [vmem:[#allocation2 + $0x40] sm:$0xff]
    %v71 = vld [vmem:[#allocation2 + $0x48] sm:$0xff]
    %v72 = vld [vmem:[#allocation2 + $0x50] sm:$0xff]
    %v73 = vld [vmem:[#allocation2 + $0x58] sm:$0xff]
    %v74 = vld [vmem:[#allocation2 + $0x60] sm:$0xff]
    %v75 = vld [vmem:[#allocation2 + $0x68] sm:$0xff]
    %v76 = vld [vmem:[#allocation2 + $0x70] sm:$0xff]
    %v77 = vld [vmem:[#allocation2 + $0x78] sm:$0xff]
    %v78 = vld [vmem:[#allocation3] sm:$0xff]
    %v79 = vld [vmem:[#allocation3 + $0x8] sm:$0xff]
    %v80 = vld [vmem:[#allocation3 + $0x10] sm:$0xff]
    %v81 = vld [vmem:[#allocation3 + $0x18] sm:$0xff]
    %v82 = vld [vmem:[#allocation3 + $0x20] sm:$0xff]
    %v83 = vld [vmem:[#allocation3 + $0x28] sm:$0xff]
    %v84 = vld [vmem:[#allocation3 + $0x30] sm:$0xff]
    %v85 = vld [vmem:[#allocation3 + $0x38] sm:$0xff]
    %v86 = vld [vmem:[#allocation5] sm:$0xff]
    %v87 = vld [vmem:[#allocation5 + $0x8] sm:$0xff]
    %v88 = vld [vmem:[#allocation5 + $0x10] sm:$0xff]
    %v89 = vld [vmem:[#allocation5 + $0x18] sm:$0xff]
    %v90 = vld [vmem:[#allocation5 + $0x20] sm:$0xff]
    %v91 = vld [vmem:[#allocation5 + $0x28] sm:$0xff]
    %v92 = vld [vmem:[#allocation5 + $0x30] sm:$0xff]
    %v93 = vld [vmem:[#allocation5 + $0x38] sm:$0xff]
    %v94 = vld [vmem:[#allocation5 + $0x40] sm:$0xff]
    %v95 = vld [vmem:[#allocation5 + $0x48] sm:$0xff]
    %v96 = vld [vmem:[#allocation5 + $0x50] sm:$0xff]
    %v97 = vld [vmem:[#allocation5 + $0x58] sm:$0xff]
    %v98 = vld [vmem:[#allocation5 + $0x60] sm:$0xff]
    %v99 = vld [vmem:[#allocation5 + $0x68] sm:$0xff]
    %v100 = vld [vmem:[#allocation5 + $0x70] sm:$0xff]
    %v101 = vld [vmem:[#allocation5 + $0x78] sm:$0xff]
    %v102 = vld [vmem:[#allocation5 + $0x80] sm:$0xff]
    %v103 = vld [vmem:[#allocation5 + $0x88] sm:$0xff]
    %v104 = vld [vmem:[#allocation5 + $0x90] sm:$0xff]
    %v105 = vld [vmem:[#allocation5 + $0x98] sm:$0xff]
    %v106 = vld [vmem:[#allocation5 + $0xa0] sm:$0xff]
    %v107 = vld [vmem:[#allocation5 + $0xa8] sm:$0xff]
    %v108 = vld [vmem:[#allocation5 + $0xb0] sm:$0xff]
    %v109 = vld [vmem:[#allocation5 + $0xb8] sm:$0xff]
    %v110 = vld [vmem:[#allocation5 + $0xc0] sm:$0xff]
    %v111 = vld [vmem:[#allocation5 + $0xc8] sm:$0xff]
    %v112 = vld [vmem:[#allocation5 + $0xd0] sm:$0xff]
    %v113 = vld [vmem:[#allocation5 + $0xd8] sm:$0xff]
    %v114 = vld [vmem:[#allocation5 + $0xe0] sm:$0xff]
    %v115 = vld [vmem:[#allocation5 + $0xe8] sm:$0xff]
    %v116 = vld [vmem:[#allocation5 + $0xf0] sm:$0xff]
    %v117 = vld [vmem:[#allocation5 + $0xf8] sm:$0xff]
    %118 = vmatprep.subr.mxu0 %v117
    %119 = vmatpush1.msra.mxu0 %v116
    %120 = vmatprep.subr.mxu0 %v115
    %121 = vmatpush1.msra.mxu0 %v114
    %122 = vmatprep.subr.mxu0 %v113
    %123 = vmatpush1.msra.mxu0 %v112
    %124 = vmatprep.subr.mxu0 %v111
    %125 = vmatpush1.msra.mxu0 %v110
    %126 = vmatprep.subr.mxu0 %v109
    %127 = vmatpush1.msra.mxu0 %v108
    %128 = vmatprep.subr.mxu0 %v107
    %129 = vmatpush1.msra.mxu0 %v106
    %130 = vmatprep.subr.mxu0 %v105
    %131 = vmatpush1.msra.mxu0 %v104
    %132 = vmatprep.subr.mxu0 %v103
    %133 = vmatpush1.msra.mxu0 %v102
    %134 = vmatprep.subr.mxu0 %v101
    %135 = vmatpush1.msra.mxu0 %v100
    %136 = vmatprep.subr.mxu0 %v99
    %137 = vmatpush1.msra.mxu0 %v98
    %138 = vmatprep.subr.mxu0 %v97
    %139 = vmatpush1.msra.mxu0 %v96
    %140 = vmatprep.subr.mxu0 %v95
    %141 = vmatpush1.msra.mxu0 %v94
    %142 = vmatprep.subr.mxu0 %v93
    %143 = vmatpush1.msra.mxu0 %v92
    %144 = vmatprep.subr.mxu0 %v91
    %145 = vmatpush1.msra.mxu0 %v90
    %146 = vmatprep.subr.mxu0 %v89
    %147 = vmatpush1.msra.mxu0 %v88
    %148 = vmatprep.subr.mxu0 %v87
    %149 = vmatpush1.msra.mxu0 %v86
    %150 = vmatprep.subr.mxu0 0.0
    %151 = vmatpush2.msra.mxu0 0.0
    %152 = vmatprep.subr.mxu0 0.0
    %153 = vmatpush2.msra.mxu0 0.0
    %154 = vmatprep.subr.mxu0 0.0
    %155 = vmatpush2.msra.mxu0 0.0
    %156 = vmatprep.subr.mxu0 0.0
    %157 = vmatpush2.msra.mxu0 0.0
    %158 = vmatprep.subr.mxu0 0.0
    %159 = vmatpush2.msra.mxu0 0.0
    %160 = vmatprep.subr.mxu0 0.0
    %161 = vmatpush2.msra.mxu0 0.0
    %162 = vmatprep.subr.mxu0 0.0
    %163 = vmatpush2.msra.mxu0 0.0
    %164 = vmatprep.subr.mxu0 0.0
    %165 = vmatpush2.msra.mxu0 0.0
    %166 = vmatprep.subr.mxu0 0.0
    %167 = vmatpush2.msra.mxu0 0.0
    %168 = vmatprep.subr.mxu0 0.0
    %169 = vmatpush2.msra.mxu0 0.0
    %170 = vmatprep.subr.mxu0 0.0
    %171 = vmatpush2.msra.mxu0 0.0
    %172 = vmatprep.subr.mxu0 0.0
    %173 = vmatpush2.msra.mxu0 0.0
    %174 = vmatprep.subr.mxu0 0.0
    %175 = vmatpush2.msra.mxu0 0.0
    %176 = vmatprep.subr.mxu0 0.0
    %177 = vmatpush2.msra.mxu0 0.0
    %178 = vmatprep.subr.mxu0 0.0
    %179 = vmatpush2.msra.mxu0 0.0
    %180 = vmatprep.subr.mxu0 0.0
    %181 = vmatpush2.msra.mxu0 0.0
    %182 = vmatprep.mubr.f32.mxu0 0.0
    %183 = vmatmul.mubr.f32.gmra.mxu0 %v78
    %v184 = vpop.f32.mrf.mxu0
    %v185 = vadd.f32 0.0, %v184
    %v186 = vpop.f32.mrf.mxu0
    %v187 = vadd.f32 0.0, %v186
    %188 = vmatprep.mubr.f32.mxu0 0.0
    %189 = vmatmul.mubr.f32.gmra.mxu0 %v79
    %v190 = vpop.f32.mrf.mxu0
    %v191 = vadd.f32 0.0, %v190
    %v192 = vpop.f32.mrf.mxu0
    %v193 = vadd.f32 0.0, %v192
    %194 = vmatprep.mubr.f32.mxu0 0.0
    %195 = vmatmul.mubr.f32.gmra.mxu0 %v80
    %v196 = vpop.f32.mrf.mxu0
    %v197 = vadd.f32 0.0, %v196
    %v198 = vpop.f32.mrf.mxu0
    %v199 = vadd.f32 0.0, %v198
    %200 = vmatprep.mubr.f32.mxu0 0.0
    %201 = vmatmul.mubr.f32.gmra.mxu0 %v81
    %v202 = vpop.f32.mrf.mxu0
    %v203 = vadd.f32 0.0, %v202
    %v204 = vpop.f32.mrf.mxu0
    %v205 = vadd.f32 0.0, %v204
    %206 = vmatprep.mubr.f32.mxu0 0.0
    %207 = vmatmul.mubr.f32.gmra.mxu0 %v82
    %v208 = vpop.f32.mrf.mxu0
    %v209 = vadd.f32 0.0, %v208
    %v210 = vpop.f32.mrf.mxu0
    %v211 = vadd.f32 0.0, %v210
    %212 = vmatprep.mubr.f32.mxu0 0.0
    %213 = vmatmul.mubr.f32.gmra.mxu0 %v83
    %v214 = vpop.f32.mrf.mxu0
    %v215 = vadd.f32 0.0, %v214
    %v216 = vpop.f32.mrf.mxu0
    %v217 = vadd.f32 0.0, %v216
    %218 = vmatprep.mubr.f32.mxu0 0.0
    %219 = vmatmul.mubr.f32.gmra.mxu0 %v84
    %v220 = vpop.f32.mrf.mxu0
    %v221 = vadd.f32 0.0, %v220
    %v222 = vpop.f32.mrf.mxu0
    %v223 = vadd.f32 0.0, %v222
    %224 = vmatprep.mubr.f32.mxu0 0.0
    %225 = vmatmul.mubr.f32.gmra.mxu0 %v85
    %v226 = vpop.f32.mrf.mxu0
    %v227 = vadd.f32 0.0, %v226
    %v228 = vpop.f32.mrf.mxu0
    %v229 = vadd.f32 0.0, %v228
    %230 = vdwg.mxu0
    %v231 = vadd.f32 %v62, %v185
    %v232 = vadd.f32 %v63, %v187
    %v233 = vadd.f32 %v64, %v191
    %v234 = vadd.f32 %v65, %v193
    %v235 = vadd.f32 %v66, %v197
    %v236 = vadd.f32 %v67, %v199
    %v237 = vadd.f32 %v68, %v203
    %v238 = vadd.f32 %v69, %v205
    %v239 = vadd.f32 %v70, %v209
    %v240 = vadd.f32 %v71, %v211
    %v241 = vadd.f32 %v72, %v215
    %v242 = vadd.f32 %v73, %v217
    %v243 = vadd.f32 %v74, %v221
    %v244 = vadd.f32 %v75, %v223
    %v245 = vadd.f32 %v76, %v227
    %v246 = vadd.f32 %v77, %v229
    %247 = vst [vmem:[#allocation2] sm:$0xff] %v231
    %248 = vst [vmem:[#allocation2 + $0x8] sm:$0xff] %v232
    %249 = vst [vmem:[#allocation2 + $0x10] sm:$0xff] %v233
    %250 = vst [vmem:[#allocation2 + $0x18] sm:$0xff] %v234
    %251 = vst [vmem:[#allocation2 + $0x20] sm:$0xff] %v235
    %252 = vst [vmem:[#allocation2 + $0x28] sm:$0xff] %v236
    %253 = vst [vmem:[#allocation2 + $0x30] sm:$0xff] %v237
    %254 = vst [vmem:[#allocation2 + $0x38] sm:$0xff] %v238
    %255 = vst [vmem:[#allocation2 + $0x40] sm:$0xff] %v239
    %256 = vst [vmem:[#allocation2 + $0x48] sm:$0xff] %v240
    %257 = vst [vmem:[#allocation2 + $0x50] sm:$0xff] %v241
    %258 = vst [vmem:[#allocation2 + $0x58] sm:$0xff] %v242
    %259 = vst [vmem:[#allocation2 + $0x60] sm:$0xff] %v243
    %260 = vst [vmem:[#allocation2 + $0x68] sm:$0xff] %v244
    %261 = vst [vmem:[#allocation2 + $0x70] sm:$0xff] %v245
    %262 = vst [vmem:[#allocation2 + $0x78] sm:$0xff] %v246
    // Predicated region
    $region26: #{causal_shaped_attention_forward.2} parent=1 // pred_check
      %p263 = pneg %p42
    $region27: #{causal_shaped_attention_forward.2} parent=1 // pred_check_branch
      %265 = sbr.rel (%p263) target = $region29
    $region28: #{causal_shaped_attention_forward.2} parent=1 // pred_region
      %v266 = vld [vmem:[#allocation2] sm:$0xff]
      %v267 = vld [vmem:[#allocation2 + $0x8] sm:$0xff]
      %v268 = vld [vmem:[#allocation2 + $0x10] sm:$0xff]
      %v269 = vld [vmem:[#allocation2 + $0x18] sm:$0xff]
      %v270 = vld [vmem:[#allocation2 + $0x20] sm:$0xff]
      %v271 = vld [vmem:[#allocation2 + $0x28] sm:$0xff]
      %v272 = vld [vmem:[#allocation2 + $0x30] sm:$0xff]
      %v273 = vld [vmem:[#allocation2 + $0x38] sm:$0xff]
      %v274 = vld [vmem:[#allocation2 + $0x40] sm:$0xff]
      %v275 = vld [vmem:[#allocation2 + $0x48] sm:$0xff]
      %v276 = vld [vmem:[#allocation2 + $0x50] sm:$0xff]
      %v277 = vld [vmem:[#allocation2 + $0x58] sm:$0xff]
      %v278 = vld [vmem:[#allocation2 + $0x60] sm:$0xff]
      %v279 = vld [vmem:[#allocation2 + $0x68] sm:$0xff]
      %v280 = vld [vmem:[#allocation2 + $0x70] sm:$0xff]
      %v281 = vld [vmem:[#allocation2 + $0x78] sm:$0xff]
      %v282 = vld [vmem:[%s2] sm:$0x3]
      %v284 = vlaneseq
      %v285 = vshrl.u32 %v284, 7
      %v286 = vsub.s32 0, %v285
      %v287 = vrot.slane %v282, %v286
      %v288 = vlaneseq
      %v289 = vshrl.u32 %v288, 7
      %v290 = vsub.s32 1, %v289
      %v291 = vrot.slane %v282, %v290
      %v294 = vadd.f32 %v266, %v287
      %v295 = vadd.f32 %v267, %v291
      %v296 = vadd.f32 %v268, %v287
      %v297 = vadd.f32 %v269, %v291
      %v298 = vadd.f32 %v270, %v287
      %v299 = vadd.f32 %v271, %v291
      %v300 = vadd.f32 %v272, %v287
      %v301 = vadd.f32 %v273, %v291
      %v302 = vadd.f32 %v274, %v287
      %v303 = vadd.f32 %v275, %v291
      %v304 = vadd.f32 %v276, %v287
      %v305 = vadd.f32 %v277, %v291
      %v306 = vadd.f32 %v278, %v287
      %v307 = vadd.f32 %v279, %v291
      %v308 = vadd.f32 %v280, %v287
      %v309 = vadd.f32 %v281, %v291
      %310 = vst [vmem:[%s3] sm:$0xff] %v294
      %311 = vst [vmem:[%s3 + $0x8] sm:$0xff] %v295
      %312 = vst [vmem:[%s3 + $0x10] sm:$0xff] %v296
      %313 = vst [vmem:[%s3 + $0x18] sm:$0xff] %v297
      %314 = vst [vmem:[%s3 + $0x20] sm:$0xff] %v298
      %315 = vst [vmem:[%s3 + $0x28] sm:$0xff] %v299
      %316 = vst [vmem:[%s3 + $0x30] sm:$0xff] %v300
      %317 = vst [vmem:[%s3 + $0x38] sm:$0xff] %v301
      %318 = vst [vmem:[%s3 + $0x40] sm:$0xff] %v302
      %319 = vst [vmem:[%s3 + $0x48] sm:$0xff] %v303
      %320 = vst [vmem:[%s3 + $0x50] sm:$0xff] %v304
      %321 = vst [vmem:[%s3 + $0x58] sm:$0xff] %v305
      %322 = vst [vmem:[%s3 + $0x60] sm:$0xff] %v306
      %323 = vst [vmem:[%s3 + $0x68] sm:$0xff] %v307
      %324 = vst [vmem:[%s3 + $0x70] sm:$0xff] %v308
      %325 = vst [vmem:[%s3 + $0x78] sm:$0xff] %v309
    $region29: #{causal_shaped_attention_forward.2} parent=1 // pred_fallthru
      _
    // Predicated region
    $region30: #{causal_shaped_attention_forward.2} parent=1 // pred_check
      _
    $region31: #{causal_shaped_attention_forward.2} parent=1 // pred_check_branch
      %327 = sbr.rel (0) target = $region33
    $region32: #{causal_shaped_attention_forward.2} parent=1 // pred_region
      _
    $region33: #{causal_shaped_attention_forward.2} parent=1 // pred_fallthru
      _
    // Predicated region
    $region34: #{causal_shaped_attention_forward.2} parent=1 // pred_check
      _
    $region35: #{causal_shaped_attention_forward.2} parent=1 // pred_check_branch
      %329 = sbr.rel (0) target = $region37
    $region36: #{causal_shaped_attention_forward.2} parent=1 // pred_region
      _
    $region37: #{causal_shaped_attention_forward.2} parent=1 // pred_fallthru
      _
    %330 = vsyncpa [#allocation4], 1
    %331 = vsyncpa [#allocation6], 1

// kernel: causal_shaped_attention_forward.3
$region0: #{causal_shaped_attention_forward.3}
  #allocation0 [shape = 'u32[]', space=smem, size = 0x4, offset = 0x4, fixed_abs, tag = 'smem constant byte address 0x4 - core index']
  #allocation1 [shape = 'u32[144,128]{1,0:T(1,128)}', space=vmem, size = 0x12000, scoped, tag = 'internal scratch']
  #allocation2 [shape = 'f32[4,8,1]{2,1,0:T(8,128)}', space=vmem, size = 0x4000, scoped, tag = 'scratch operand']
  #allocation3 [shape = 'f32[4,8,1]{2,1,0:T(8,128)}', space=vmem, size = 0x4000, scoped, tag = 'scratch operand']
  #allocation4 [shape = 'f32[4,8,32]{2,1,0:T(8,128)}', space=vmem, size = 0x4000, scoped, tag = 'scratch operand']
  #allocation5 [shape = 'f32[8,128]{1,0:T(8,128)}', space=vmem, size = 0x1000, scoped, tag = 'scratch operand']
  %s0 = inlined_call_operand.vmem [shape: f32[3], index: 0, kind: input, shape index: {}]
  %s1 = inlined_call_operand.vmem [shape: f32[2,32,256], index: 1, kind: input, shape index: {}, may-alias: {1,2}]
  %s2 = inlined_call_operand.vmem [shape: f32[2,32,256], index: 2, kind: input, shape index: {}, may-alias: {1,2}]
  %s3 = inlined_call_operand.vmem [shape: f32[2,32,128], index: 3, kind: input, shape index: {}]
  %s4 = inlined_call_operand.hbm [shape: f32[2,32,128], index: 4, kind: output, shape index: {}]
  %s5 = sld [smem:[#allocation0]]
  $region65: #{causal_shaped_attention_forward.3} parent=0
    _
  %s7 = ssub.s32 1, %s5
  %s8 = scalar_select 0, %s7, %s5
  $region1: #{causal_shaped_attention_forward.3} parent=0
    #allocation6 [shape = 'u8[512]{0}', space=smem, size = 0x200, scoped, tag = 'input window, operand 0, single buffered']
    #allocation7 [shape = 's32[2]{0}', space=sflag, size = 0x8, scoped, tag = 'scoped memory for causal_shaped_attention_forward.3']
    #allocation8 [shape = 's32[2]{0}', space=sflag, size = 0x8, scoped, tag = 'scoped memory for causal_shaped_attention_forward.3']
    #allocation9 [shape = 'u8[8192]{0}', space=vmem, size = 0x2000, scoped, tag = 'output window, operand 0']
    %9 = vsyncpa [#allocation8], 0
    %10 = vsyncpa [#allocation7], 0
    %s11 = scalar_lea.sflag [#allocation7], 1
    %12 = vsyncpa %s11, 0
    loop: start=0, step=1, limit=34
    $region2: #{causal_shaped_attention_forward.3} parent=1 // loop_pre_header
      _
    $region3: #{causal_shaped_attention_forward.3} parent=1 // loop_header
      %s14 = sphi 0, %s18
      %p15 = scmp.ge.s32.totalorder %s14, 34
      %s21 = sphi 0, %s40
      %s22 = sphi 0, %s36
      %s23 = sphi 0, %s32
      %s24 = sphi 0, %s21
      %s25 = sphi 0, %s22
      %s26 = sphi 0, %s23
      %s27 = sphi 0, %s24
      %s28 = sphi 0, %s25
      %s29 = sphi 0, %s26
      %s41 = sphi 0, %s41
      %s43 = sphi 0, %s41
      %s44 = sphi 0, %s43
      %s58 = sphi 0, %s44
      %s66 = sphi 0, %s68
      %s69 = sphi 0, %s66
      %s70 = sphi 0, %s69
      %s86 = sphi 0, %s70
      %s94 = sphi 0, %s96
      %s97 = sphi 0, %s94
      %s98 = sphi 0, %s97
      %s114 = sphi 0, %s98
      %s122 = sphi 0, %s124
      %s125 = sphi 0, %s122
      %s126 = sphi 0, %s125
      %s142 = sphi 0, %s126
      %s150 = sphi 0, %s152
      %s153 = sphi 0, %s150
      %s154 = sphi 0, %s153
      %s170 = sphi 0, %s154
    $region4: #{causal_shaped_attention_forward.3} parent=1 // loop_header_branch
      %17 = sbr.rel (%p15) target = $region8
    $region5: #{causal_shaped_attention_forward.3} parent=1 // loop_body
      %s19 = ssub.s32 %s14, 1
      %s20 = ssub.s32 %s14, 2
      %s30 = sadd.s32 1, %s23
      %p31 = scmp.ge.s32.totalorder %s30, 4
      %s32 = scalar_select %p31, 0, %s30
      %s33 = sadd.s32 1, %s22
      %s34 = scalar_select %p31, %s33, %s22
      %p35 = scmp.ge.s32.totalorder %s34, 4
      %s36 = scalar_select %p35, 0, %s34
      %s37 = sadd.s32 1, %s21
      %s38 = scalar_select %p35, %s37, %s21
      %p39 = scmp.ge.s32.totalorder %s38, 2
      %s40 = scalar_select %p39, 0, %s38
      %s42 = sadd.s32 %s41, 1
      %p45 = scmp.eq.s32.totalorder %s14, 31
      %p46 = scmp.ne.s32.totalorder %s41, %s43
      %p47 = scmp.eq.s32.totalorder %s14, 0
      %p48 = por %p46, %p47
      %p49 = scmp.ne.s32.totalorder %s41, %s43
      %p50 = scmp.eq.s32.totalorder %s19, 31
      %p51 = por %p49, %p50
      %p52 = scmp.ne.s32.totalorder %s43, %s44
      %p53 = scmp.eq.s32.totalorder %s19, 0
      %p54 = por %p52, %p53
      %p55 = scmp.ne.s32.totalorder %s43, %s44
      %p56 = scmp.eq.s32.totalorder %s20, 31
      %p57 = por %p55, %p56
      %p59 = scmp.ne.s32.totalorder %s44, %s58
      %p60 = scmp.eq.s32.totalorder %s20, 0
      %p61 = por %p59, %p60
      %s62 = ssub.s32 %s21, %s40
      %s63 = ssub.s32 %s22, %s36
      %s64 = sor.u32 %s62, %s63
      %p65 = scmp.eq.s32.totalorder %s64, 0
      %s67 = sadd.s32 %s66, 1
      %s68 = scalar_select %p65, %s66, %s67
      %p71 = pneg %p65
      %p72 = scmp.eq.s32.totalorder %s14, 31
      %p73 = por %p71, %p72
      %p74 = scmp.ne.s32.totalorder %s66, %s69
      %p75 = scmp.eq.s32.totalorder %s14, 0
      %p76 = por %p74, %p75
      %p77 = scmp.ne.s32.totalorder %s66, %s69
      %p78 = scmp.eq.s32.totalorder %s19, 31
      %p79 = por %p77, %p78
      %p80 = scmp.ne.s32.totalorder %s69, %s70
      %p81 = scmp.eq.s32.totalorder %s19, 0
      %p82 = por %p80, %p81
      %p83 = scmp.ne.s32.totalorder %s69, %s70
      %p84 = scmp.eq.s32.totalorder %s20, 31
      %p85 = por %p83, %p84
      %p87 = scmp.ne.s32.totalorder %s70, %s86
      %p88 = scmp.eq.s32.totalorder %s20, 0
      %p89 = por %p87, %p88
      %s90 = ssub.s32 %s21, %s40
      %s91 = ssub.s32 %s23, %s32
      %s92 = sor.u32 %s90, %s91
      %p93 = scmp.eq.s32.totalorder %s92, 0
      %s95 = sadd.s32 %s94, 1
      %s96 = scalar_select %p93, %s94, %s95
      %p99 = pneg %p93
      %p100 = scmp.eq.s32.totalorder %s14, 31
      %p101 = por %p99, %p100
      %p102 = scmp.ne.s32.totalorder %s94, %s97
      %p103 = scmp.eq.s32.totalorder %s14, 0
      %p104 = por %p102, %p103
      %p105 = scmp.ne.s32.totalorder %s94, %s97
      %p106 = scmp.eq.s32.totalorder %s19, 31
      %p107 = por %p105, %p106
      %p108 = scmp.ne.s32.totalorder %s97, %s98
      %p109 = scmp.eq.s32.totalorder %s19, 0
      %p110 = por %p108, %p109
      %p111 = scmp.ne.s32.totalorder %s97, %s98
      %p112 = scmp.eq.s32.totalorder %s20, 31
      %p113 = por %p111, %p112
      %p115 = scmp.ne.s32.totalorder %s98, %s114
      %p116 = scmp.eq.s32.totalorder %s20, 0
      %p117 = por %p115, %p116
      %s118 = ssub.s32 %s21, %s40
      %s119 = ssub.s32 %s23, %s32
      %s120 = sor.u32 %s118, %s119
      %p121 = scmp.eq.s32.totalorder %s120, 0
      %s123 = sadd.s32 %s122, 1
      %s124 = scalar_select %p121, %s122, %s123
      %p127 = pneg %p121
      %p128 = scmp.eq.s32.totalorder %s14, 31
      %p129 = por %p127, %p128
      %p130 = scmp.ne.s32.totalorder %s122, %s125
      %p131 = scmp.eq.s32.totalorder %s14, 0
      %p132 = por %p130, %p131
      %p133 = scmp.ne.s32.totalorder %s122, %s125
      %p134 = scmp.eq.s32.totalorder %s19, 31
      %p135 = por %p133, %p134
      %p136 = scmp.ne.s32.totalorder %s125, %s126
      %p137 = scmp.eq.s32.totalorder %s19, 0
      %p138 = por %p136, %p137
      %p139 = scmp.ne.s32.totalorder %s125, %s126
      %p140 = scmp.eq.s32.totalorder %s20, 31
      %p141 = por %p139, %p140
      %p143 = scmp.ne.s32.totalorder %s126, %s142
      %p144 = scmp.eq.s32.totalorder %s20, 0
      %p145 = por %p143, %p144
      %s146 = ssub.s32 %s21, %s40
      %s147 = ssub.s32 %s22, %s36
      %s148 = sor.u32 %s146, %s147
      %p149 = scmp.eq.s32.totalorder %s148, 0
      %s151 = sadd.s32 %s150, 1
      %s152 = scalar_select %p149, %s150, %s151
      %p155 = pneg %p149
      %p156 = scmp.eq.s32.totalorder %s14, 31
      %p157 = por %p155, %p156
      %p158 = scmp.ne.s32.totalorder %s150, %s153
      %p159 = scmp.eq.s32.totalorder %s14, 0
      %p160 = por %p158, %p159
      %p161 = scmp.ne.s32.totalorder %s150, %s153
      %p162 = scmp.eq.s32.totalorder %s19, 31
      %p163 = por %p161, %p162
      %p164 = scmp.ne.s32.totalorder %s153, %s154
      %p165 = scmp.eq.s32.totalorder %s19, 0
      %p166 = por %p164, %p165
      %p167 = scmp.ne.s32.totalorder %s153, %s154
      %p168 = scmp.eq.s32.totalorder %s20, 31
      %p169 = por %p167, %p168
      %p171 = scmp.ne.s32.totalorder %s154, %s170
      %p172 = scmp.eq.s32.totalorder %s20, 0
      %p173 = por %p171, %p172
      %p174 = scmp.le.s32.totalorder 1, %s14
      %p175 = scmp.lt.s32.totalorder %s14, 33
      %p176 = pnand %p174, %p175
      %p177 = pneg %p176
      // Predicated region
      $region9: #{causal_shaped_attention_forward.3} parent=5 // pred_check
        _
      $region10: #{causal_shaped_attention_forward.3} parent=5 // pred_check_branch
        %179 = sbr.rel (%p176) target = $region12
      $region11: #{causal_shaped_attention_forward.3} parent=5 // pred_region
        %s180 = ssub.s32 %s14, 1
        // Predicated region
        $region13: #{causal_shaped_attention_forward.3} parent=11 // pred_check
          %p181 = pneg %p54
        $region14: #{causal_shaped_attention_forward.3} parent=11 // pred_check_branch
          %183 = sbr.rel (%p181) target = $region16
        $region15: #{causal_shaped_attention_forward.3} parent=11 // pred_region
          %s185 = ssub.s32 16, 16
          %186 = vsyncadd [#allocation8], %s185
          %s188 = sshll.u32 %s0, 4
          %s189 = int_to_ptr.vmem [resolvable:$true] %s188
          %191 = dma.vmem_to_smem %s189, 16, [#allocation6], [#allocation8]
        $region16: #{causal_shaped_attention_forward.3} parent=11 // pred_fallthru
          _
      $region12: #{causal_shaped_attention_forward.3} parent=5 // pred_fallthru
        _
      %p192 = scmp.lt.s32.totalorder %s14, 32
      // Predicated region
      $region17: #{causal_shaped_attention_forward.3} parent=5 // pred_check
        %p193 = pneg %p192
      $region18: #{causal_shaped_attention_forward.3} parent=5 // pred_check_branch
        %195 = sbr.rel (%p193) target = $region20
      $region19: #{causal_shaped_attention_forward.3} parent=5 // pred_region
        // Predicated region
        $region21: #{causal_shaped_attention_forward.3} parent=19 // pred_check
          %p196 = pneg %p76
        $region22: #{causal_shaped_attention_forward.3} parent=19 // pred_check_branch
          %198 = sbr.rel (%p196) target = $region24
        $region23: #{causal_shaped_attention_forward.3} parent=19 // pred_region
          %p199 = scmp.lt.s32.totalorder %s21, 1
          %s200 = scalar_select %p199, %s21, 1
          %p201 = scmp.lt.s32.totalorder %s22, 3
          %s202 = scalar_select %p201, %s22, 3
          %s203 = smul.addr %s202, 2
          %s204 = smul.addr %s200, 8
          %s205 = sadd.s32 %s203, %s204
          %s206 = smul.addr %s205, 8
          %s207 = scalar_lea.vmem %s1, %s206
        $region24: #{causal_shaped_attention_forward.3} parent=19 // pred_fallthru
          _
        // Predicated region
        $region25: #{causal_shaped_attention_forward.3} parent=19 // pred_check
          %p208 = pneg %p104
        $region26: #{causal_shaped_attention_forward.3} parent=19 // pred_check_branch
          %210 = sbr.rel (%p208) target = $region28
        $region27: #{causal_shaped_attention_forward.3} parent=19 // pred_region
          %p211 = scmp.lt.s32.totalorder %s21, 1
          %s212 = scalar_select %p211, %s21, 1
          %p213 = scmp.lt.s32.totalorder %s23, 3
          %s214 = scalar_select %p213, %s23, 3
          %s215 = smul.addr %s214, 2
          %s216 = sadd.s32 1, %s215
          %s217 = smul.addr %s212, 8
          %s218 = sadd.s32 %s216, %s217
          %s219 = smul.addr %s218, 8
          %s220 = scalar_lea.vmem %s2, %s219
        $region28: #{causal_shaped_attention_forward.3} parent=19 // pred_fallthru
          _
        // Predicated region
        $region29: #{causal_shaped_attention_forward.3} parent=19 // pred_check
          %p221 = pneg %p132
        $region30: #{causal_shaped_attention_forward.3} parent=19 // pred_check_branch
          %223 = sbr.rel (%p221) target = $region32
        $region31: #{causal_shaped_attention_forward.3} parent=19 // pred_region
          %p224 = scmp.lt.s32.totalorder %s21, 1
          %s225 = scalar_select %p224, %s21, 1
          %p226 = scmp.lt.s32.totalorder %s23, 3
          %s227 = scalar_select %p226, %s23, 3
          %s228 = smul.addr %s225, 4
          %s229 = sadd.s32 %s227, %s228
          %s230 = smul.addr %s229, 8
          %s231 = scalar_lea.vmem %s3, %s230
        $region32: #{causal_shaped_attention_forward.3} parent=19 // pred_fallthru
          _
      $region20: #{causal_shaped_attention_forward.3} parent=5 // pred_fallthru
        _
      %p232 = scmp.le.s32.totalorder 1, %s14
      %p233 = scmp.lt.s32.totalorder %s14, 33
      %p234 = pnand %p232, %p233
      %p235 = pneg %p234
      // Predicated region
      $region33: #{causal_shaped_attention_forward.3} parent=5 // pred_check
        _
      $region34: #{causal_shaped_attention_forward.3} parent=5 // pred_check_branch
        %237 = sbr.rel (%p234) target = $region36
      $region35: #{causal_shaped_attention_forward.3} parent=5 // pred_region
        %s238 = ssub.s32 %s14, 1
        // Predicated region
        $region37: #{causal_shaped_attention_forward.3} parent=35 // pred_check
          %p239 = pneg %p54
        $region38: #{causal_shaped_attention_forward.3} parent=35 // pred_check_branch
          %241 = sbr.rel (%p239) target = $region40
        $region39: #{causal_shaped_attention_forward.3} parent=35 // pred_region
          %242 = dma.done [#allocation8], 16
        $region40: #{causal_shaped_attention_forward.3} parent=35 // pred_fallthru
          _
        %243 = sfence
        %p244 = pneg %p54
        %p245 = pneg %p51
        %p246 = scmp.lt.s32.totalorder %s24, 1
        %s247 = scalar_select %p246, %s24, 1
        %p248 = scmp.lt.s32.totalorder %s25, 3
        %s249 = scalar_select %p248, %s25, 3
        %s250 = smul.addr %s249, 2
        %s251 = smul.addr %s247, 8
        %s252 = sadd.s32 %s250, %s251
        %s253 = smul.addr %s252, 8
        %s254 = scalar_lea.vmem %s1, %s253
        %p255 = pneg %p82
        %p256 = pneg %p79
        %p257 = scmp.lt.s32.totalorder %s24, 1
        %s258 = scalar_select %p257, %s24, 1
        %p259 = scmp.lt.s32.totalorder %s26, 3
        %s260 = scalar_select %p259, %s26, 3
        %s261 = smul.addr %s260, 2
        %s262 = sadd.s32 1, %s261
        %s263 = smul.addr %s258, 8
        %s264 = sadd.s32 %s262, %s263
        %s265 = smul.addr %s264, 8
        %s266 = scalar_lea.vmem %s2, %s265
        %p267 = pneg %p110
        %p268 = pneg %p107
        %p269 = scmp.lt.s32.totalorder %s24, 1
        %s270 = scalar_select %p269, %s24, 1
        %p271 = scmp.lt.s32.totalorder %s26, 3
        %s272 = scalar_select %p271, %s26, 3
        %s273 = smul.addr %s270, 4
        %s274 = sadd.s32 %s272, %s273
        %s275 = smul.addr %s274, 8
        %s276 = scalar_lea.vmem %s3, %s275
        %p277 = pneg %p138
        %p278 = pneg %p135
        %p279 = pneg %p166
        %p280 = pneg %p163
        %s281 = sand.u32 %s153, 1
        %s282 = scalar_lea.sflag [#allocation7], %s281
        %s283 = sand.u32 %s153, 1
        %s284 = smul.addr %s283, 8
        %s285 = scalar_lea.vmem [#allocation9], %s284
        %p286 = scmp.lt.s32.totalorder %s24, 1
        %s287 = scalar_select %p286, %s24, 1
        %p288 = scmp.lt.s32.totalorder %s25, 3
        %s289 = scalar_select %p288, %s25, 3
        %s290 = smul.addr %s289, 2
        %s291 = smul.addr %s287, 8
        %s292 = sadd.s32 %s290, %s291
        %s293 = smul.addr %s292, 8
        %s294 = scalar_lea.vmem %s1, %s293
        %p295 = scmp.lt.s32.totalorder %s24, 1
        %s296 = scalar_select %p295, %s24, 1
        %p297 = scmp.lt.s32.totalorder %s26, 3
        %s298 = scalar_select %p297, %s26, 3
        %s299 = smul.addr %s298, 2
        %s300 = sadd.s32 1, %s299
        %s301 = smul.addr %s296, 8
        %s302 = sadd.s32 %s300, %s301
        %s303 = smul.addr %s302, 8
        %s304 = scalar_lea.vmem %s2, %s303
        %p305 = scmp.lt.s32.totalorder %s24, 1
        %s306 = scalar_select %p305, %s24, 1
        %p307 = scmp.lt.s32.totalorder %s26, 3
        %s308 = scalar_select %p307, %s26, 3
        %s309 = smul.addr %s306, 4
        %s310 = sadd.s32 %s308, %s309
        %s311 = smul.addr %s310, 8
        %s312 = scalar_lea.vmem %s3, %s311
        %s313 = smul.u32 %s25, 8
        %s314 = smul.u32 %s26, 8
        %s315 = sld [smem:[#allocation6]]
        %s316 = sld [smem:[#allocation6 + $0x1]]
        %s317 = sld [smem:[#allocation6 + $0x2]]
        %p318 = scmp.eq.s32.totalorder %s26, 0
        // Predicated region
        $region41: #{causal_shaped_attention_forward.3} parent=35 // pred_check
          %p319 = pneg %p318
        $region42: #{causal_shaped_attention_forward.3} parent=35 // pred_check_branch
          %321 = sbr.rel (%p319) target = $region44
        $region43: #{causal_shaped_attention_forward.3} parent=35 // pred_region
          %vm322 = vcmask 7168
          %323 = vst.msk [vmem:[#allocation2] sm:$0xff] %vm322, -inf
          %324 = vst.msk [vmem:[#allocation2 + $0x8] sm:$0xff] %vm322, -inf
          %325 = vst.msk [vmem:[#allocation2 + $0x10] sm:$0xff] %vm322, -inf
          %326 = vst.msk [vmem:[#allocation2 + $0x18] sm:$0xff] %vm322, -inf
          %327 = vst.msk [vmem:[#allocation3] sm:$0xff] %vm322, 0.0
          %328 = vst.msk [vmem:[#allocation3 + $0x8] sm:$0xff] %vm322, 0.0
          %329 = vst.msk [vmem:[#allocation3 + $0x10] sm:$0xff] %vm322, 0.0
          %330 = vst.msk [vmem:[#allocation3 + $0x18] sm:$0xff] %vm322, 0.0
          %vm331 = vcmask 261120
          %332 = vst.msk [vmem:[#allocation4] sm:$0xff] %vm331, 0.0
          %333 = vst.msk [vmem:[#allocation4 + $0x8] sm:$0xff] %vm331, 0.0
          %334 = vst.msk [vmem:[#allocation4 + $0x10] sm:$0xff] %vm331, 0.0
          %335 = vst.msk [vmem:[#allocation4 + $0x18] sm:$0xff] %vm331, 0.0
          %336 = vst [vmem:[#allocation5] sm:$0xff] 0.0
        $region44: #{causal_shaped_attention_forward.3} parent=35 // pred_fallthru
          _
        %s337 = sadd.s32 %s313, 7
        %p338 = scmp.le.s32.totalorder %s314, %s337
        // Predicated region
        $region45: #{causal_shaped_attention_forward.3} parent=35 // pred_check
          %p339 = pneg %p338
        $region46: #{causal_shaped_attention_forward.3} parent=35 // pred_check_branch
          %341 = sbr.rel (%p339) target = $region48
        $region47: #{causal_shaped_attention_forward.3} parent=35 // pred_region
          %v342 = vlaneseq
          %v343 = vshrl.u32 %v342, 7
          %v344 = vstv %s313
          %v345 = vadd.s32 %v344, %v343
          %v346 = vstv %s314
          %v347 = vsub.s32 %v345, %v346
          %v348 = vlaneseq
          %v349 = vand.u32 %v348, 127
          %vm350 = vcmp.le.s32.totalorder %v349, %v347
          %v351 = vcvt.s32.f32 %v345
          %v352 = vadd.f32 %v351, 1.0
          %v353 = vstv %s317
          %v354 = vrcp.pop %v352
          %v355 = vmul.f32 %v353, %v354
          %vm356 = vcmp.eq.s32.totalorder %v349, %v347
          %v357 = vstv %s315
          %v358 = vsel %vm356, %v357, 0.0
          %v359 = vsel %vm350, 1, 0
          %v360 = vcvt.s32.f32 %v359
          %v361 = vmul.f32 %v360, %v355
          %v362 = vsub.f32 %v358, %v361
          %v363 = vld [vmem:[%s312] sm:$0xff]
          %v364 = vld [vmem:[#allocation5] sm:$0xff]
          %vm365 = vcmask 64512
          %v367 = vsel %vm365, %v362, 0
          %369 = vmatprep.subr.mxu0 0.0
          %370 = vmatpush1.msra.mxu0 0.0
          %371 = vmatprep.subr.mxu0 0.0
          %372 = vmatpush1.msra.mxu0 0.0
          %373 = vmatprep.subr.mxu0 0.0
          %374 = vmatpush1.msra.mxu0 0.0
          %375 = vmatprep.subr.mxu0 0.0
          %376 = vmatpush1.msra.mxu0 0.0
          %377 = vmatprep.subr.mxu0 0.0
          %378 = vmatpush1.msra.mxu0 0.0
          %379 = vmatprep.subr.mxu0 0.0
          %380 = vmatpush1.msra.mxu0 0.0
          %381 = vmatprep.subr.mxu0 0.0
          %382 = vmatpush1.msra.mxu0 0.0
          %383 = vmatprep.subr.mxu0 0.0
          %384 = vmatpush1.msra.mxu0 0.0
          %385 = vmatprep.subr.mxu0 0.0
          %386 = vmatpush1.msra.mxu0 0.0
          %387 = vmatprep.subr.mxu0 0.0
          %388 = vmatpush1.msra.mxu0 0.0
          %389 = vmatprep.subr.mxu0 0.0
          %390 = vmatpush1.msra.mxu0 0.0
          %391 = vmatprep.subr.mxu0 0.0
          %392 = vmatpush1.msra.mxu0 0.0
          %393 = vmatprep.subr.mxu0 0.0
          %394 = vmatpush1.msra.mxu0 0.0
          %395 = vmatprep.subr.mxu0 0.0
          %396 = vmatpush1.msra.mxu0 0.0
          %397 = vmatprep.subr.mxu0 0.0
          %398 = vmatpush1.msra.mxu0 0.0
          %399 = vmatprep.subr.mxu0 0.0
          %400 = vmatpush1.msra.mxu0 %v363
          %401 = vmatprep.subr.mxu0 0.0
          %402 = vmatpush2.msra.mxu0 0.0
          %403 = vmatprep.subr.mxu0 0.0
          %404 = vmatpush2.msra.mxu0 0.0
          %405 = vmatprep.subr.mxu0 0.0
          %406 = vmatpush2.msra.mxu0 0.0
          %407 = vmatprep.subr.mxu0 0.0
          %408 = vmatpush2.msra.mxu0 0.0
          %409 = vmatprep.subr.mxu0 0.0
          %410 = vmatpush2.msra.mxu0 0.0
          %411 = vmatprep.subr.mxu0 0.0
          %412 = vmatpush2.msra.mxu0 0.0
          %413 = vmatprep.subr.mxu0 0.0
          %414 = vmatpush2.msra.mxu0 0.0
          %415 = vmatprep.subr.mxu0 0.0
          %416 = vmatpush2.msra.mxu0 0.0
          %417 = vmatprep.subr.mxu0 0.0
          %418 = vmatpush2.msra.mxu0 0.0
          %419 = vmatprep.subr.mxu0 0.0
          %420 = vmatpush2.msra.mxu0 0.0
          %421 = vmatprep.subr.mxu0 0.0
          %422 = vmatpush2.msra.mxu0 0.0
          %423 = vmatprep.subr.mxu0 0.0
          %424 = vmatpush2.msra.mxu0 0.0
          %425 = vmatprep.subr.mxu0 0.0
          %426 = vmatpush2.msra.mxu0 0.0
          %427 = vmatprep.subr.mxu0 0.0
          %428 = vmatpush2.msra.mxu0 0.0
          %429 = vmatprep.subr.mxu0 0.0
          %430 = vmatpush2.msra.mxu0 0.0
          %431 = vmatprep.subr.mxu0 0.0
          %432 = vmatpush2.msra.mxu0 0.0
          %433 = vmatprep.mubr.f32.mxu0 0.0
          %434 = vmatmul.mubr.f32.gmra.mxu0 %v367
          %v435 = vpop.f32.mrf.mxu0
          %v436 = vadd.f32 0.0, %v435
          %v437 = vpop.f32.mrf.mxu0
          %438 = vdwg.mxu0
          %v439 = vadd.f32 %v364, %v436
          %440 = vst [vmem:[#allocation5] sm:$0xff] %v439
          %v441 = vld [vmem:[%s294] sm:$0xff]
          %v442 = vld [vmem:[%s304] sm:$0xff]
          %v443 = vld [vmem:[%s312] sm:$0xff]
          %vm444 = vcmask 261120
          %v446 = vsel %vm444, %v441, 0
          %v449 = vsel %vm444, %v442, 0
          %451 = vmatprep.subr.mxu0 0.0
          %452 = vmatpush1.xpose.msra.mxu0 0.0
          %453 = vmatprep.subr.mxu0 0.0
          %454 = vmatpush1.xpose.msra.mxu0 0.0
          %455 = vmatprep.subr.mxu0 0.0
          %456 = vmatpush1.xpose.msra.mxu0 0.0
          %457 = vmatprep.subr.mxu0 0.0
          %458 = vmatpush1.xpose.msra.mxu0 0.0
          %459 = vmatprep.subr.mxu0 0.0
          %460 = vmatpush1.xpose.msra.mxu0 0.0
          %461 = vmatprep.subr.mxu0 0.0
          %462 = vmatpush1.xpose.msra.mxu0 0.0
          %463 = vmatprep.subr.mxu0 0.0
          %464 = vmatpush1.xpose.msra.mxu0 0.0
          %465 = vmatprep.subr.mxu0 0.0
          %466 = vmatpush1.xpose.msra.mxu0 0.0
          %467 = vmatprep.subr.mxu0 0.0
          %468 = vmatpush1.xpose.msra.mxu0 0.0
          %469 = vmatprep.subr.mxu0 0.0
          %470 = vmatpush1.xpose.msra.mxu0 0.0
          %471 = vmatprep.subr.mxu0 0.0
          %472 = vmatpush1.xpose.msra.mxu0 0.0
          %473 = vmatprep.subr.mxu0 0.0
          %474 = vmatpush1.xpose.msra.mxu0 0.0
          %475 = vmatprep.subr.mxu0 0.0
          %476 = vmatpush1.xpose.msra.mxu0 0.0
          %477 = vmatprep.subr.mxu0 0.0
          %478 = vmatpush1.xpose.msra.mxu0 0.0
          %479 = vmatprep.subr.mxu0 0.0
          %480 = vmatpush1.xpose.msra.mxu0 0.0
          %481 = vmatprep.subr.mxu0 0.0
          %482 = vmatpush1.xpose.msra.mxu0 %v449
          %483 = vmatprep.subr.mxu0 0.0
          %484 = vmatpush2.xpose.msra.mxu0 0.0
          %485 = vmatprep.subr.mxu0 0.0
          %486 = vmatpush2.xpose.msra.mxu0 0.0
          %487 = vmatprep.subr.mxu0 0.0
          %488 = vmatpush2.xpose.msra.mxu0 0.0
          %489 = vmatprep.subr.mxu0 0.0
          %490 = vmatpush2.xpose.msra.mxu0 0.0
          %491 = vmatprep.subr.mxu0 0.0
          %492 = vmatpush2.xpose.msra.mxu0 0.0
          %493 = vmatprep.subr.mxu0 0.0
          %494 = vmatpush2.xpose.msra.mxu0 0.0
          %495 = vmatprep.subr.mxu0 0.0
          %496 = vmatpush2.xpose.msra.mxu0 0.0
          %497 = vmatprep.subr.mxu0 0.0
          %498 = vmatpush2.xpose.msra.mxu0 0.0
          %499 = vmatprep.subr.mxu0 0.0
          %500 = vmatpush2.xpose.msra.mxu0 0.0
          %501 = vmatprep.subr.mxu0 0.0
          %502 = vmatpush2.xpose.msra.mxu0 0.0
          %503 = vmatprep.subr.mxu0 0.0
          %504 = vmatpush2.xpose.msra.mxu0 0.0
          %505 = vmatprep.subr.mxu0 0.0
          %506 = vmatpush2.xpose.msra.mxu0 0.0
          %507 = vmatprep.subr.mxu0 0.0
          %508 = vmatpush2.xpose.msra.mxu0 0.0
          %509 = vmatprep.subr.mxu0 0.0
          %510 = vmatpush2.xpose.msra.mxu0 0.0
          %511 = vmatprep.subr.mxu0 0.0
          %512 = vmatpush2.xpose.msra.mxu0 0.0
          %513 = vmatprep.subr.mxu0 0.0
          %514 = vmatpush2.xpose.msra.mxu0 0.0
          %515 = vmatprep.mubr.f32.mxu0 0.0
          %516 = vmatmul.mubr.f32.gmra.mxu0 %v446
          %v517 = vpop.f32.mrf.mxu0
          %v518 = vadd.f32 0.0, %v517
          %v519 = vpop.f32.mrf.mxu0
          %520 = vdwg.mxu0
          %v521 = vsel %vm350, %v518, -inf
          %v522 = vld [vmem:[#allocation2] sm:$0xff]
          %v523 = vsel %vm365, %v521, -inf
          %524 = vmax.xlane.f32.xlu0 %v523
          %v525 = vpop.xlane.xlu0 %524
          %v526 = vmax.f32 %v522, %v525
          %v527 = vsub.f32 %v522, %v526
          %v528 = vmul.f32 %v527, 1.442695
          %v529 = vpow.pop %v528
          %531 = vset.pattern.permute.xlu0 0
          %532 = vperm.xlu0 %531, %v526
          %v533 = vpop.permute.xlu0 %532
          %v535 = vsub.f32 %v521, %v533
          %v536 = vmul.f32 %v535, 1.442695
          %v537 = vpow.pop %v536
          %v538 = vld [vmem:[#allocation3] sm:$0xff]
          %v539 = vmul.f32 %v529, %v538
          %v540 = vsel %vm365, %v537, 0.0
          %541 = vadd.xlane.f32.xlu0 %v540
          %v542 = vpop.xlane.xlu0 %541
          %v543 = vadd.f32 %v539, %v542
          %vm544 = vcmask 7168
          %545 = vst.msk [vmem:[#allocation3] sm:$0xff] %vm544, %v543
          %v546 = vld [vmem:[#allocation4] sm:$0xff]
          %548 = vset.pattern.permute.xlu0 0
          %549 = vperm.xlu0 %548, %v529
          %v550 = vpop.permute.xlu0 %549
          %v552 = vmul.f32 %v550, %v546
          %v554 = vsel %vm365, %v537, 0
          %556 = vmatprep.subr.mxu0 0.0
          %557 = vmatpush1.msra.mxu0 0.0
          %558 = vmatprep.subr.mxu0 0.0
          %559 = vmatpush1.msra.mxu0 0.0
          %560 = vmatprep.subr.mxu0 0.0
          %561 = vmatpush1.msra.mxu0 0.0
          %562 = vmatprep.subr.mxu0 0.0
          %563 = vmatpush1.msra.mxu0 0.0
          %564 = vmatprep.subr.mxu0 0.0
          %565 = vmatpush1.msra.mxu0 0.0
          %566 = vmatprep.subr.mxu0 0.0
          %567 = vmatpush1.msra.mxu0 0.0
          %568 = vmatprep.subr.mxu0 0.0
          %569 = vmatpush1.msra.mxu0 0.0
          %570 = vmatprep.subr.mxu0 0.0
          %571 = vmatpush1.msra.mxu0 0.0
          %572 = vmatprep.subr.mxu0 0.0
          %573 = vmatpush1.msra.mxu0 0.0
          %574 = vmatprep.subr.mxu0 0.0
          %575 = vmatpush1.msra.mxu0 0.0
          %576 = vmatprep.subr.mxu0 0.0
          %577 = vmatpush1.msra.mxu0 0.0
          %578 = vmatprep.subr.mxu0 0.0
          %579 = vmatpush1.msra.mxu0 0.0
          %580 = vmatprep.subr.mxu0 0.0
          %581 = vmatpush1.msra.mxu0 0.0
          %582 = vmatprep.subr.mxu0 0.0
          %583 = vmatpush1.msra.mxu0 0.0
          %584 = vmatprep.subr.mxu0 0.0
          %585 = vmatpush1.msra.mxu0 0.0
          %586 = vmatprep.subr.mxu0 0.0
          %587 = vmatpush1.msra.mxu0 %v443
          %588 = vmatprep.subr.mxu0 0.0
          %589 = vmatpush2.msra.mxu0 0.0
          %590 = vmatprep.subr.mxu0 0.0
          %591 = vmatpush2.msra.mxu0 0.0
          %592 = vmatprep.subr.mxu0 0.0
          %593 = vmatpush2.msra.mxu0 0.0
          %594 = vmatprep.subr.mxu0 0.0
          %595 = vmatpush2.msra.mxu0 0.0
          %596 = vmatprep.subr.mxu0 0.0
          %597 = vmatpush2.msra.mxu0 0.0
          %598 = vmatprep.subr.mxu0 0.0
          %599 = vmatpush2.msra.mxu0 0.0
          %600 = vmatprep.subr.mxu0 0.0
          %601 = vmatpush2.msra.mxu0 0.0
          %602 = vmatprep.subr.mxu0 0.0
          %603 = vmatpush2.msra.mxu0 0.0
          %604 = vmatprep.subr.mxu0 0.0
          %605 = vmatpush2.msra.mxu0 0.0
          %606 = vmatprep.subr.mxu0 0.0
          %607 = vmatpush2.msra.mxu0 0.0
          %608 = vmatprep.subr.mxu0 0.0
          %609 = vmatpush2.msra.mxu0 0.0
          %610 = vmatprep.subr.mxu0 0.0
          %611 = vmatpush2.msra.mxu0 0.0
          %612 = vmatprep.subr.mxu0 0.0
          %613 = vmatpush2.msra.mxu0 0.0
          %614 = vmatprep.subr.mxu0 0.0
          %615 = vmatpush2.msra.mxu0 0.0
          %616 = vmatprep.subr.mxu0 0.0
          %617 = vmatpush2.msra.mxu0 0.0
          %618 = vmatprep.subr.mxu0 0.0
          %619 = vmatpush2.msra.mxu0 0.0
          %620 = vmatprep.mubr.f32.mxu0 0.0
          %621 = vmatmul.mubr.f32.gmra.mxu0 %v554
          %v622 = vpop.f32.mrf.mxu0
          %v623 = vadd.f32 0.0, %v622
          %v624 = vpop.f32.mrf.mxu0
          %625 = vdwg.mxu0
          %v626 = vadd.f32 %v552, %v623
          %627 = vst.msk [vmem:[#allocation4] sm:$0xff] %vm444, %v626
          %628 = vst.msk [vmem:[#allocation2] sm:$0xff] %vm544, %v526
          %v629 = vld [vmem:[%s294] sm:$0xff]
          %v630 = vld [vmem:[%s304] sm:$0xff]
          %v631 = vld [vmem:[%s312] sm:$0xff]
          %633 = vrot.lane.b32.xlu0 %v629, 96
          %v634 = vpop.permute.xlu0 %633
          %636 = vrot.lane.b32.xlu0 %v630, 96
          %v637 = vpop.permute.xlu0 %636
          %v638 = vsel %vm444, %v634, 0
          %v640 = vsel %vm444, %v637, 0
          %642 = vmatprep.subr.mxu0 0.0
          %643 = vmatpush1.xpose.msra.mxu0 0.0
          %644 = vmatprep.subr.mxu0 0.0
          %645 = vmatpush1.xpose.msra.mxu0 0.0
          %646 = vmatprep.subr.mxu0 0.0
          %647 = vmatpush1.xpose.msra.mxu0 0.0
          %648 = vmatprep.subr.mxu0 0.0
          %649 = vmatpush1.xpose.msra.mxu0 0.0
          %650 = vmatprep.subr.mxu0 0.0
          %651 = vmatpush1.xpose.msra.mxu0 0.0
          %652 = vmatprep.subr.mxu0 0.0
          %653 = vmatpush1.xpose.msra.mxu0 0.0
          %654 = vmatprep.subr.mxu0 0.0
          %655 = vmatpush1.xpose.msra.mxu0 0.0
          %656 = vmatprep.subr.mxu0 0.0
          %657 = vmatpush1.xpose.msra.mxu0 0.0
          %658 = vmatprep.subr.mxu0 0.0
          %659 = vmatpush1.xpose.msra.mxu0 0.0
          %660 = vmatprep.subr.mxu0 0.0
          %661 = vmatpush1.xpose.msra.mxu0 0.0
          %662 = vmatprep.subr.mxu0 0.0
          %663 = vmatpush1.xpose.msra.mxu0 0.0
          %664 = vmatprep.subr.mxu0 0.0
          %665 = vmatpush1.xpose.msra.mxu0 0.0
          %666 = vmatprep.subr.mxu0 0.0
          %667 = vmatpush1.xpose.msra.mxu0 0.0
          %668 = vmatprep.subr.mxu0 0.0
          %669 = vmatpush1.xpose.msra.mxu0 0.0
          %670 = vmatprep.subr.mxu0 0.0
          %671 = vmatpush1.xpose.msra.mxu0 0.0
          %672 = vmatprep.subr.mxu0 0.0
          %673 = vmatpush1.xpose.msra.mxu0 %v640
          %674 = vmatprep.subr.mxu0 0.0
          %675 = vmatpush2.xpose.msra.mxu0 0.0
          %676 = vmatprep.subr.mxu0 0.0
          %677 = vmatpush2.xpose.msra.mxu0 0.0
          %678 = vmatprep.subr.mxu0 0.0
          %679 = vmatpush2.xpose.msra.mxu0 0.0
          %680 = vmatprep.subr.mxu0 0.0
          %681 = vmatpush2.xpose.msra.mxu0 0.0
          %682 = vmatprep.subr.mxu0 0.0
          %683 = vmatpush2.xpose.msra.mxu0 0.0
          %684 = vmatprep.subr.mxu0 0.0
          %685 = vmatpush2.xpose.msra.mxu0 0.0
          %686 = vmatprep.subr.mxu0 0.0
          %687 = vmatpush2.xpose.msra.mxu0 0.0
          %688 = vmatprep.subr.mxu0 0.0
          %689 = vmatpush2.xpose.msra.mxu0 0.0
          %690 = vmatprep.subr.mxu0 0.0
          %691 = vmatpush2.xpose.msra.mxu0 0.0
          %692 = vmatprep.subr.mxu0 0.0
          %693 = vmatpush2.xpose.msra.mxu0 0.0
          %694 = vmatprep.subr.mxu0 0.0
          %695 = vmatpush2.xpose.msra.mxu0 0.0
          %696 = vmatprep.subr.mxu0 0.0
          %697 = vmatpush2.xpose.msra.mxu0 0.0
          %698 = vmatprep.subr.mxu0 0.0
          %699 = vmatpush2.xpose.msra.mxu0 0.0
          %700 = vmatprep.subr.mxu0 0.0
          %701 = vmatpush2.xpose.msra.mxu0 0.0
          %702 = vmatprep.subr.mxu0 0.0
          %703 = vmatpush2.xpose.msra.mxu0 0.0
          %704 = vmatprep.subr.mxu0 0.0
          %705 = vmatpush2.xpose.msra.mxu0 0.0
          %706 = vmatprep.mubr.f32.mxu0 0.0
          %707 = vmatmul.mubr.f32.gmra.mxu0 %v638
          %v708 = vpop.f32.mrf.mxu0
          %v709 = vadd.f32 0.0, %v708
          %v710 = vpop.f32.mrf.mxu0
          %711 = vdwg.mxu0
          %v712 = vsel %vm350, %v709, -inf
          %s713 = scalar_lea.vmem [#allocation2], 8
          %v714 = vld [vmem:[%s713] sm:$0xff]
          %v715 = vsel %vm365, %v712, -inf
          %716 = vmax.xlane.f32.xlu0 %v715
          %v717 = vpop.xlane.xlu0 %716
          %v718 = vmax.f32 %v714, %v717
          %v719 = vsub.f32 %v714, %v718
          %v720 = vmul.f32 %v719, 1.442695
          %v721 = vpow.pop %v720
          %723 = vset.pattern.permute.xlu0 0
          %724 = vperm.xlu0 %723, %v718
          %v725 = vpop.permute.xlu0 %724
          %v727 = vsub.f32 %v712, %v725
          %v728 = vmul.f32 %v727, 1.442695
          %v729 = vpow.pop %v728
          %s730 = scalar_lea.vmem [#allocation3], 8
          %v731 = vld [vmem:[%s730] sm:$0xff]
          %v732 = vmul.f32 %v721, %v731
          %v733 = vsel %vm365, %v729, 0.0
          %734 = vadd.xlane.f32.xlu0 %v733
          %v735 = vpop.xlane.xlu0 %734
          %v736 = vadd.f32 %v732, %v735
          %737 = vst.msk [vmem:[%s730] sm:$0xff] %vm544, %v736
          %s738 = scalar_lea.vmem [#allocation4], 8
          %v739 = vld [vmem:[%s738] sm:$0xff]
          %741 = vset.pattern.permute.xlu0 0
          %742 = vperm.xlu0 %741, %v721
          %v743 = vpop.permute.xlu0 %742
          %v745 = vmul.f32 %v743, %v739
          %747 = vrot.lane.b32.xlu0 %v631, 96
          %v748 = vpop.permute.xlu0 %747
          %v751 = vsel %vm365, %v729, 0
          %753 = vmatprep.subr.mxu0 0.0
          %754 = vmatpush1.msra.mxu0 0.0
          %755 = vmatprep.subr.mxu0 0.0
          %756 = vmatpush1.msra.mxu0 0.0
          %757 = vmatprep.subr.mxu0 0.0
          %758 = vmatpush1.msra.mxu0 0.0
          %759 = vmatprep.subr.mxu0 0.0
          %760 = vmatpush1.msra.mxu0 0.0
          %761 = vmatprep.subr.mxu0 0.0
          %762 = vmatpush1.msra.mxu0 0.0
          %763 = vmatprep.subr.mxu0 0.0
          %764 = vmatpush1.msra.mxu0 0.0
          %765 = vmatprep.subr.mxu0 0.0
          %766 = vmatpush1.msra.mxu0 0.0
          %767 = vmatprep.subr.mxu0 0.0
          %768 = vmatpush1.msra.mxu0 0.0
          %769 = vmatprep.subr.mxu0 0.0
          %770 = vmatpush1.msra.mxu0 0.0
          %771 = vmatprep.subr.mxu0 0.0
          %772 = vmatpush1.msra.mxu0 0.0
          %773 = vmatprep.subr.mxu0 0.0
          %774 = vmatpush1.msra.mxu0 0.0
          %775 = vmatprep.subr.mxu0 0.0
          %776 = vmatpush1.msra.mxu0 0.0
          %777 = vmatprep.subr.mxu0 0.0
          %778 = vmatpush1.msra.mxu0 0.0
          %779 = vmatprep.subr.mxu0 0.0
          %780 = vmatpush1.msra.mxu0 0.0
          %781 = vmatprep.subr.mxu0 0.0
          %782 = vmatpush1.msra.mxu0 0.0
          %783 = vmatprep.subr.mxu0 0.0
          %784 = vmatpush1.msra.mxu0 %v748
          %785 = vmatprep.subr.mxu0 0.0
          %786 = vmatpush2.msra.mxu0 0.0
          %787 = vmatprep.subr.mxu0 0.0
          %788 = vmatpush2.msra.mxu0 0.0
          %789 = vmatprep.subr.mxu0 0.0
          %790 = vmatpush2.msra.mxu0 0.0
          %791 = vmatprep.subr.mxu0 0.0
          %792 = vmatpush2.msra.mxu0 0.0
          %793 = vmatprep.subr.mxu0 0.0
          %794 = vmatpush2.msra.mxu0 0.0
          %795 = vmatprep.subr.mxu0 0.0
          %796 = vmatpush2.msra.mxu0 0.0
          %797 = vmatprep.subr.mxu0 0.0
          %798 = vmatpush2.msra.mxu0 0.0
          %799 = vmatprep.subr.mxu0 0.0
          %800 = vmatpush2.msra.mxu0 0.0
          %801 = vmatprep.subr.mxu0 0.0
          %802 = vmatpush2.msra.mxu0 0.0
          %803 = vmatprep.subr.mxu0 0.0
          %804 = vmatpush2.msra.mxu0 0.0
          %805 = vmatprep.subr.mxu0 0.0
          %806 = vmatpush2.msra.mxu0 0.0
          %807 = vmatprep.subr.mxu0 0.0
          %808 = vmatpush2.msra.mxu0 0.0
          %809 = vmatprep.subr.mxu0 0.0
          %810 = vmatpush2.msra.mxu0 0.0
          %811 = vmatprep.subr.mxu0 0.0
          %812 = vmatpush2.msra.mxu0 0.0
          %813 = vmatprep.subr.mxu0 0.0
          %814 = vmatpush2.msra.mxu0 0.0
          %815 = vmatprep.subr.mxu0 0.0
          %816 = vmatpush2.msra.mxu0 0.0
          %817 = vmatprep.mubr.f32.mxu0 0.0
          %818 = vmatmul.mubr.f32.gmra.mxu0 %v751
          %v819 = vpop.f32.mrf.mxu0
          %v820 = vadd.f32 0.0, %v819
          %v821 = vpop.f32.mrf.mxu0
          %822 = vdwg.mxu0
          %v823 = vadd.f32 %v745, %v820
          %824 = vst.msk [vmem:[%s738] sm:$0xff] %vm444, %v823
          %825 = vst.msk [vmem:[%s713] sm:$0xff] %vm544, %v718
          %v826 = vld [vmem:[%s294] sm:$0xff]
          %v827 = vld [vmem:[%s304] sm:$0xff]
          %v828 = vld [vmem:[%s312] sm:$0xff]
          %830 = vrot.lane.b32.xlu0 %v826, 64
          %v831 = vpop.permute.xlu0 %830
          %833 = vrot.lane.b32.xlu0 %v827, 64
          %v834 = vpop.permute.xlu0 %833
          %v835 = vsel %vm444, %v831, 0
          %v837 = vsel %vm444, %v834, 0
          %839 = vmatprep.subr.mxu0 0.0
          %840 = vmatpush1.xpose.msra.mxu0 0.0
          %841 = vmatprep.subr.mxu0 0.0
          %842 = vmatpush1.xpose.msra.mxu0 0.0
          %843 = vmatprep.subr.mxu0 0.0
          %844 = vmatpush1.xpose.msra.mxu0 0.0
          %845 = vmatprep.subr.mxu0 0.0
          %846 = vmatpush1.xpose.msra.mxu0 0.0
          %847 = vmatprep.subr.mxu0 0.0
          %848 = vmatpush1.xpose.msra.mxu0 0.0
          %849 = vmatprep.subr.mxu0 0.0
          %850 = vmatpush1.xpose.msra.mxu0 0.0
          %851 = vmatprep.subr.mxu0 0.0
          %852 = vmatpush1.xpose.msra.mxu0 0.0
          %853 = vmatprep.subr.mxu0 0.0
          %854 = vmatpush1.xpose.msra.mxu0 0.0
          %855 = vmatprep.subr.mxu0 0.0
          %856 = vmatpush1.xpose.msra.mxu0 0.0
          %857 = vmatprep.subr.mxu0 0.0
          %858 = vmatpush1.xpose.msra.mxu0 0.0
          %859 = vmatprep.subr.mxu0 0.0
          %860 = vmatpush1.xpose.msra.mxu0 0.0
          %861 = vmatprep.subr.mxu0 0.0
          %862 = vmatpush1.xpose.msra.mxu0 0.0
          %863 = vmatprep.subr.mxu0 0.0
          %864 = vmatpush1.xpose.msra.mxu0 0.0
          %865 = vmatprep.subr.mxu0 0.0
          %866 = vmatpush1.xpose.msra.mxu0 0.0
          %867 = vmatprep.subr.mxu0 0.0
          %868 = vmatpush1.xpose.msra.mxu0 0.0
          %869 = vmatprep.subr.mxu0 0.0
          %870 = vmatpush1.xpose.msra.mxu0 %v837
          %871 = vmatprep.subr.mxu0 0.0
          %872 = vmatpush2.xpose.msra.mxu0 0.0
          %873 = vmatprep.subr.mxu0 0.0
          %874 = vmatpush2.xpose.msra.mxu0 0.0
          %875 = vmatprep.subr.mxu0 0.0
          %876 = vmatpush2.xpose.msra.mxu0 0.0
          %877 = vmatprep.subr.mxu0 0.0
          %878 = vmatpush2.xpose.msra.mxu0 0.0
          %879 = vmatprep.subr.mxu0 0.0
          %880 = vmatpush2.xpose.msra.mxu0 0.0
          %881 = vmatprep.subr.mxu0 0.0
          %882 = vmatpush2.xpose.msra.mxu0 0.0
          %883 = vmatprep.subr.mxu0 0.0
          %884 = vmatpush2.xpose.msra.mxu0 0.0
          %885 = vmatprep.subr.mxu0 0.0
          %886 = vmatpush2.xpose.msra.mxu0 0.0
          %887 = vmatprep.subr.mxu0 0.0
          %888 = vmatpush2.xpose.msra.mxu0 0.0
          %889 = vmatprep.subr.mxu0 0.0
          %890 = vmatpush2.xpose.msra.mxu0 0.0
          %891 = vmatprep.subr.mxu0 0.0
          %892 = vmatpush2.xpose.msra.mxu0 0.0
          %893 = vmatprep.subr.mxu0 0.0
          %894 = vmatpush2.xpose.msra.mxu0 0.0
          %895 = vmatprep.subr.mxu0 0.0
          %896 = vmatpush2.xpose.msra.mxu0 0.0
          %897 = vmatprep.subr.mxu0 0.0
          %898 = vmatpush2.xpose.msra.mxu0 0.0
          %899 = vmatprep.subr.mxu0 0.0
          %900 = vmatpush2.xpose.msra.mxu0 0.0
          %901 = vmatprep.subr.mxu0 0.0
          %902 = vmatpush2.xpose.msra.mxu0 0.0
          %903 = vmatprep.mubr.f32.mxu0 0.0
          %904 = vmatmul.mubr.f32.gmra.mxu0 %v835
          %v905 = vpop.f32.mrf.mxu0
          %v906 = vadd.f32 0.0, %v905
          %v907 = vpop.f32.mrf.mxu0
          %908 = vdwg.mxu0
          %v909 = vsel %vm350, %v906, -inf
          %s910 = scalar_lea.vmem [#allocation2], 16
          %v911 = vld [vmem:[%s910] sm:$0xff]
          %v912 = vsel %vm365, %v909, -inf
          %913 = vmax.xlane.f32.xlu0 %v912
          %v914 = vpop.xlane.xlu0 %913
          %v915 = vmax.f32 %v911, %v914
          %v916 = vsub.f32 %v911, %v915
          %v917 = vmul.f32 %v916, 1.442695
          %v918 = vpow.pop %v917
          %920 = vset.pattern.permute.xlu0 0
          %921 = vperm.xlu0 %920, %v915
          %v922 = vpop.permute.xlu0 %921
          %v924 = vsub.f32 %v909, %v922
          %v925 = vmul.f32 %v924, 1.442695
          %v926 = vpow.pop %v925
          %s927 = scalar_lea.vmem [#allocation3], 16
          %v928 = vld [vmem:[%s927] sm:$0xff]
          %v929 = vmul.f32 %v918, %v928
          %v930 = vsel %vm365, %v926, 0.0
          %931 = vadd.xlane.f32.xlu0 %v930
          %v932 = vpop.xlane.xlu0 %931
          %v933 = vadd.f32 %v929, %v932
          %934 = vst.msk [vmem:[%s927] sm:$0xff] %vm544, %v933
          %s935 = scalar_lea.vmem [#allocation4], 16
          %v936 = vld [vmem:[%s935] sm:$0xff]
          %938 = vset.pattern.permute.xlu0 0
          %939 = vperm.xlu0 %938, %v918
          %v940 = vpop.permute.xlu0 %939
          %v942 = vmul.f32 %v940, %v936
          %944 = vrot.lane.b32.xlu0 %v828, 64
          %v945 = vpop.permute.xlu0 %944
          %v948 = vsel %vm365, %v926, 0
          %950 = vmatprep.subr.mxu0 0.0
          %951 = vmatpush1.msra.mxu0 0.0
          %952 = vmatprep.subr.mxu0 0.0
          %953 = vmatpush1.msra.mxu0 0.0
          %954 = vmatprep.subr.mxu0 0.0
          %955 = vmatpush1.msra.mxu0 0.0
          %956 = vmatprep.subr.mxu0 0.0
          %957 = vmatpush1.msra.mxu0 0.0
          %958 = vmatprep.subr.mxu0 0.0
          %959 = vmatpush1.msra.mxu0 0.0
          %960 = vmatprep.subr.mxu0 0.0
          %961 = vmatpush1.msra.mxu0 0.0
          %962 = vmatprep.subr.mxu0 0.0
          %963 = vmatpush1.msra.mxu0 0.0
          %964 = vmatprep.subr.mxu0 0.0
          %965 = vmatpush1.msra.mxu0 0.0
          %966 = vmatprep.subr.mxu0 0.0
          %967 = vmatpush1.msra.mxu0 0.0
          %968 = vmatprep.subr.mxu0 0.0
          %969 = vmatpush1.msra.mxu0 0.0
          %970 = vmatprep.subr.mxu0 0.0
          %971 = vmatpush1.msra.mxu0 0.0
          %972 = vmatprep.subr.mxu0 0.0
          %973 = vmatpush1.msra.mxu0 0.0
          %974 = vmatprep.subr.mxu0 0.0
          %975 = vmatpush1.msra.mxu0 0.0
          %976 = vmatprep.subr.mxu0 0.0
          %977 = vmatpush1.msra.mxu0 0.0
          %978 = vmatprep.subr.mxu0 0.0
          %979 = vmatpush1.msra.mxu0 0.0
          %980 = vmatprep.subr.mxu0 0.0
          %981 = vmatpush1.msra.mxu0 %v945
          %982 = vmatprep.subr.mxu0 0.0
          %983 = vmatpush2.msra.mxu0 0.0
          %984 = vmatprep.subr.mxu0 0.0
          %985 = vmatpush2.msra.mxu0 0.0
          %986 = vmatprep.subr.mxu0 0.0
          %987 = vmatpush2.msra.mxu0 0.0
          %988 = vmatprep.subr.mxu0 0.0
          %989 = vmatpush2.msra.mxu0 0.0
          %990 = vmatprep.subr.mxu0 0.0
          %991 = vmatpush2.msra.mxu0 0.0
          %992 = vmatprep.subr.mxu0 0.0
          %993 = vmatpush2.msra.mxu0 0.0
          %994 = vmatprep.subr.mxu0 0.0
          %995 = vmatpush2.msra.mxu0 0.0
          %996 = vmatprep.subr.mxu0 0.0
          %997 = vmatpush2.msra.mxu0 0.0
          %998 = vmatprep.subr.mxu0 0.0
          %999 = vmatpush2.msra.mxu0 0.0
          %1000 = vmatprep.subr.mxu0 0.0
          %1001 = vmatpush2.msra.mxu0 0.0
          %1002 = vmatprep.subr.mxu0 0.0
          %1003 = vmatpush2.msra.mxu0 0.0
          %1004 = vmatprep.subr.mxu0 0.0
          %1005 = vmatpush2.msra.mxu0 0.0
          %1006 = vmatprep.subr.mxu0 0.0
          %1007 = vmatpush2.msra.mxu0 0.0
          %1008 = vmatprep.subr.mxu0 0.0
          %1009 = vmatpush2.msra.mxu0 0.0
          %1010 = vmatprep.subr.mxu0 0.0
          %1011 = vmatpush2.msra.mxu0 0.0
          %1012 = vmatprep.subr.mxu0 0.0
          %1013 = vmatpush2.msra.mxu0 0.0
          %1014 = vmatprep.mubr.f32.mxu0 0.0
          %1015 = vmatmul.mubr.f32.gmra.mxu0 %v948
          %v1016 = vpop.f32.mrf.mxu0
          %v1017 = vadd.f32 0.0, %v1016
          %v1018 = vpop.f32.mrf.mxu0
          %1019 = vdwg.mxu0
          %v1020 = vadd.f32 %v942, %v1017
          %1021 = vst.msk [vmem:[%s935] sm:$0xff] %vm444, %v1020
          %1022 = vst.msk [vmem:[%s910] sm:$0xff] %vm544, %v915
          %v1023 = vld [vmem:[%s294] sm:$0xff]
          %v1024 = vld [vmem:[%s304] sm:$0xff]
          %v1025 = vld [vmem:[%s312] sm:$0xff]
          %1027 = vrot.lane.b32.xlu0 %v1023, 32
          %v1028 = vpop.permute.xlu0 %1027
          %1030 = vrot.lane.b32.xlu0 %v1024, 32
          %v1031 = vpop.permute.xlu0 %1030
          %v1032 = vsel %vm444, %v1028, 0
          %v1034 = vsel %vm444, %v1031, 0
          %1036 = vmatprep.subr.mxu0 0.0
          %1037 = vmatpush1.xpose.msra.mxu0 0.0
          %1038 = vmatprep.subr.mxu0 0.0
          %1039 = vmatpush1.xpose.msra.mxu0 0.0
          %1040 = vmatprep.subr.mxu0 0.0
          %1041 = vmatpush1.xpose.msra.mxu0 0.0
          %1042 = vmatprep.subr.mxu0 0.0
          %1043 = vmatpush1.xpose.msra.mxu0 0.0
          %1044 = vmatprep.subr.mxu0 0.0
          %1045 = vmatpush1.xpose.msra.mxu0 0.0
          %1046 = vmatprep.subr.mxu0 0.0
          %1047 = vmatpush1.xpose.msra.mxu0 0.0
          %1048 = vmatprep.subr.mxu0 0.0
          %1049 = vmatpush1.xpose.msra.mxu0 0.0
          %1050 = vmatprep.subr.mxu0 0.0
          %1051 = vmatpush1.xpose.msra.mxu0 0.0
          %1052 = vmatprep.subr.mxu0 0.0
          %1053 = vmatpush1.xpose.msra.mxu0 0.0
          %1054 = vmatprep.subr.mxu0 0.0
          %1055 = vmatpush1.xpose.msra.mxu0 0.0
          %1056 = vmatprep.subr.mxu0 0.0
          %1057 = vmatpush1.xpose.msra.mxu0 0.0
          %1058 = vmatprep.subr.mxu0 0.0
          %1059 = vmatpush1.xpose.msra.mxu0 0.0
          %1060 = vmatprep.subr.mxu0 0.0
          %1061 = vmatpush1.xpose.msra.mxu0 0.0
          %1062 = vmatprep.subr.mxu0 0.0
          %1063 = vmatpush1.xpose.msra.mxu0 0.0
          %1064 = vmatprep.subr.mxu0 0.0
          %1065 = vmatpush1.xpose.msra.mxu0 0.0
          %1066 = vmatprep.subr.mxu0 0.0
          %1067 = vmatpush1.xpose.msra.mxu0 %v1034
          %1068 = vmatprep.subr.mxu0 0.0
          %1069 = vmatpush2.xpose.msra.mxu0 0.0
          %1070 = vmatprep.subr.mxu0 0.0
          %1071 = vmatpush2.xpose.msra.mxu0 0.0
          %1072 = vmatprep.subr.mxu0 0.0
          %1073 = vmatpush2.xpose.msra.mxu0 0.0
          %1074 = vmatprep.subr.mxu0 0.0
          %1075 = vmatpush2.xpose.msra.mxu0 0.0
          %1076 = vmatprep.subr.mxu0 0.0
          %1077 = vmatpush2.xpose.msra.mxu0 0.0
          %1078 = vmatprep.subr.mxu0 0.0
          %1079 = vmatpush2.xpose.msra.mxu0 0.0
          %1080 = vmatprep.subr.mxu0 0.0
          %1081 = vmatpush2.xpose.msra.mxu0 0.0
          %1082 = vmatprep.subr.mxu0 0.0
          %1083 = vmatpush2.xpose.msra.mxu0 0.0
          %1084 = vmatprep.subr.mxu0 0.0
          %1085 = vmatpush2.xpose.msra.mxu0 0.0
          %1086 = vmatprep.subr.mxu0 0.0
          %1087 = vmatpush2.xpose.msra.mxu0 0.0
          %1088 = vmatprep.subr.mxu0 0.0
          %1089 = vmatpush2.xpose.msra.mxu0 0.0
          %1090 = vmatprep.subr.mxu0 0.0
          %1091 = vmatpush2.xpose.msra.mxu0 0.0
          %1092 = vmatprep.subr.mxu0 0.0
          %1093 = vmatpush2.xpose.msra.mxu0 0.0
          %1094 = vmatprep.subr.mxu0 0.0
          %1095 = vmatpush2.xpose.msra.mxu0 0.0
          %1096 = vmatprep.subr.mxu0 0.0
          %1097 = vmatpush2.xpose.msra.mxu0 0.0
          %1098 = vmatprep.subr.mxu0 0.0
          %1099 = vmatpush2.xpose.msra.mxu0 0.0
          %1100 = vmatprep.mubr.f32.mxu0 0.0
          %1101 = vmatmul.mubr.f32.gmra.mxu0 %v1032
          %v1102 = vpop.f32.mrf.mxu0
          %v1103 = vadd.f32 0.0, %v1102
          %v1104 = vpop.f32.mrf.mxu0
          %1105 = vdwg.mxu0
          %v1106 = vsel %vm350, %v1103, -inf
          %s1107 = scalar_lea.vmem [#allocation2], 24
          %v1108 = vld [vmem:[%s1107] sm:$0xff]
          %v1109 = vsel %vm365, %v1106, -inf
          %1110 = vmax.xlane.f32.xlu0 %v1109
          %v1111 = vpop.xlane.xlu0 %1110
          %v1112 = vmax.f32 %v1108, %v1111
          %v1113 = vsub.f32 %v1108, %v1112
          %v1114 = vmul.f32 %v1113, 1.442695
          %v1115 = vpow.pop %v1114
          %1117 = vset.pattern.permute.xlu0 0
          %1118 = vperm.xlu0 %1117, %v1112
          %v1119 = vpop.permute.xlu0 %1118
          %v1121 = vsub.f32 %v1106, %v1119
          %v1122 = vmul.f32 %v1121, 1.442695
          %v1123 = vpow.pop %v1122
          %s1124 = scalar_lea.vmem [#allocation3], 24
          %v1125 = vld [vmem:[%s1124] sm:$0xff]
          %v1126 = vmul.f32 %v1115, %v1125
          %v1127 = vsel %vm365, %v1123, 0.0
          %1128 = vadd.xlane.f32.xlu0 %v1127
          %v1129 = vpop.xlane.xlu0 %1128
          %v1130 = vadd.f32 %v1126, %v1129
          %1131 = vst.msk [vmem:[%s1124] sm:$0xff] %vm544, %v1130
          %s1132 = scalar_lea.vmem [#allocation4], 24
          %v1133 = vld [vmem:[%s1132] sm:$0xff]
          %1135 = vset.pattern.permute.xlu0 0
          %1136 = vperm.xlu0 %1135, %v1115
          %v1137 = vpop.permute.xlu0 %1136
          %v1139 = vmul.f32 %v1137, %v1133
          %1141 = vrot.lane.b32.xlu0 %v1025, 32
          %v1142 = vpop.permute.xlu0 %1141
          %v1145 = vsel %vm365, %v1123, 0
          %1147 = vmatprep.subr.mxu0 0.0
          %1148 = vmatpush1.msra.mxu0 0.0
          %1149 = vmatprep.subr.mxu0 0.0
          %1150 = vmatpush1.msra.mxu0 0.0
          %1151 = vmatprep.subr.mxu0 0.0
          %1152 = vmatpush1.msra.mxu0 0.0
          %1153 = vmatprep.subr.mxu0 0.0
          %1154 = vmatpush1.msra.mxu0 0.0
          %1155 = vmatprep.subr.mxu0 0.0
          %1156 = vmatpush1.msra.mxu0 0.0
          %1157 = vmatprep.subr.mxu0 0.0
          %1158 = vmatpush1.msra.mxu0 0.0
          %1159 = vmatprep.subr.mxu0 0.0
          %1160 = vmatpush1.msra.mxu0 0.0
          %1161 = vmatprep.subr.mxu0 0.0
          %1162 = vmatpush1.msra.mxu0 0.0
          %1163 = vmatprep.subr.mxu0 0.0
          %1164 = vmatpush1.msra.mxu0 0.0
          %1165 = vmatprep.subr.mxu0 0.0
          %1166 = vmatpush1.msra.mxu0 0.0
          %1167 = vmatprep.subr.mxu0 0.0
          %1168 = vmatpush1.msra.mxu0 0.0
          %1169 = vmatprep.subr.mxu0 0.0
          %1170 = vmatpush1.msra.mxu0 0.0
          %1171 = vmatprep.subr.mxu0 0.0
          %1172 = vmatpush1.msra.mxu0 0.0
          %1173 = vmatprep.subr.mxu0 0.0
          %1174 = vmatpush1.msra.mxu0 0.0
          %1175 = vmatprep.subr.mxu0 0.0
          %1176 = vmatpush1.msra.mxu0 0.0
          %1177 = vmatprep.subr.mxu0 0.0
          %1178 = vmatpush1.msra.mxu0 %v1142
          %1179 = vmatprep.subr.mxu0 0.0
          %1180 = vmatpush2.msra.mxu0 0.0
          %1181 = vmatprep.subr.mxu0 0.0
          %1182 = vmatpush2.msra.mxu0 0.0
          %1183 = vmatprep.subr.mxu0 0.0
          %1184 = vmatpush2.msra.mxu0 0.0
          %1185 = vmatprep.subr.mxu0 0.0
          %1186 = vmatpush2.msra.mxu0 0.0
          %1187 = vmatprep.subr.mxu0 0.0
          %1188 = vmatpush2.msra.mxu0 0.0
          %1189 = vmatprep.subr.mxu0 0.0
          %1190 = vmatpush2.msra.mxu0 0.0
          %1191 = vmatprep.subr.mxu0 0.0
          %1192 = vmatpush2.msra.mxu0 0.0
          %1193 = vmatprep.subr.mxu0 0.0
          %1194 = vmatpush2.msra.mxu0 0.0
          %1195 = vmatprep.subr.mxu0 0.0
          %1196 = vmatpush2.msra.mxu0 0.0
          %1197 = vmatprep.subr.mxu0 0.0
          %1198 = vmatpush2.msra.mxu0 0.0
          %1199 = vmatprep.subr.mxu0 0.0
          %1200 = vmatpush2.msra.mxu0 0.0
          %1201 = vmatprep.subr.mxu0 0.0
          %1202 = vmatpush2.msra.mxu0 0.0
          %1203 = vmatprep.subr.mxu0 0.0
          %1204 = vmatpush2.msra.mxu0 0.0
          %1205 = vmatprep.subr.mxu0 0.0
          %1206 = vmatpush2.msra.mxu0 0.0
          %1207 = vmatprep.subr.mxu0 0.0
          %1208 = vmatpush2.msra.mxu0 0.0
          %1209 = vmatprep.subr.mxu0 0.0
          %1210 = vmatpush2.msra.mxu0 0.0
          %1211 = vmatprep.mubr.f32.mxu0 0.0
          %1212 = vmatmul.mubr.f32.gmra.mxu0 %v1145
          %v1213 = vpop.f32.mrf.mxu0
          %v1214 = vadd.f32 0.0, %v1213
          %v1215 = vpop.f32.mrf.mxu0
          %1216 = vdwg.mxu0
          %v1217 = vadd.f32 %v1139, %v1214
          %1218 = vst.msk [vmem:[%s1132] sm:$0xff] %vm444, %v1217
          %1219 = vst.msk [vmem:[%s1107] sm:$0xff] %vm544, %v1112
        $region48: #{causal_shaped_attention_forward.3} parent=35 // pred_fallthru
          _
        %p1220 = scmp.eq.s32.totalorder %s26, 3
        // Predicated region
        $region49: #{causal_shaped_attention_forward.3} parent=35 // pred_check
          %p1221 = pneg %p1220
        $region50: #{causal_shaped_attention_forward.3} parent=35 // pred_check_branch
          %1223 = sbr.rel (%p1221) target = $region52
        $region51: #{causal_shaped_attention_forward.3} parent=35 // pred_region
          %v1224 = vld [vmem:[#allocation3] sm:$0xff]
          %v1225 = vstv %s316
          %v1226 = vrcp.pop %v1224
          %v1227 = vmul.f32 %v1225, %v1226
          %v1228 = vld [vmem:[#allocation4] sm:$0xff]
          %1230 = vset.pattern.permute.xlu0 0
          %1231 = vperm.xlu0 %1230, %v1227
          %v1232 = vpop.permute.xlu0 %1231
          %v1234 = vmul.f32 %v1228, %v1232
          %s1235 = scalar_lea.vmem [#allocation3], 8
          %v1236 = vld [vmem:[%s1235] sm:$0xff]
          %v1237 = vrcp.pop %v1236
          %v1238 = vmul.f32 %v1225, %v1237
          %s1239 = scalar_lea.vmem [#allocation4], 8
          %v1240 = vld [vmem:[%s1239] sm:$0xff]
          %1242 = vset.pattern.permute.xlu0 0
          %1243 = vperm.xlu0 %1242, %v1238
          %v1244 = vpop.permute.xlu0 %1243
          %v1246 = vmul.f32 %v1240, %v1244
          %s1247 = scalar_lea.vmem [#allocation3], 16
          %v1248 = vld [vmem:[%s1247] sm:$0xff]
          %v1249 = vrcp.pop %v1248
          %v1250 = vmul.f32 %v1225, %v1249
          %s1251 = scalar_lea.vmem [#allocation4], 16
          %v1252 = vld [vmem:[%s1251] sm:$0xff]
          %1254 = vset.pattern.permute.xlu0 0
          %1255 = vperm.xlu0 %1254, %v1250
          %v1256 = vpop.permute.xlu0 %1255
          %v1258 = vmul.f32 %v1252, %v1256
          %s1259 = scalar_lea.vmem [#allocation3], 24
          %v1260 = vld [vmem:[%s1259] sm:$0xff]
          %v1261 = vrcp.pop %v1260
          %v1262 = vmul.f32 %v1225, %v1261
          %s1263 = scalar_lea.vmem [#allocation4], 24
          %v1264 = vld [vmem:[%s1263] sm:$0xff]
          %1266 = vset.pattern.permute.xlu0 0
          %1267 = vperm.xlu0 %1266, %v1262
          %v1268 = vpop.permute.xlu0 %1267
          %v1270 = vmul.f32 %v1264, %v1268
          %1272 = vrot.lane.b32.xlu0 %v1246, 32
          %v1273 = vpop.permute.xlu0 %1272
          %1276 = vrot.lane.b32.xlu0 %v1258, 64
          %v1277 = vpop.permute.xlu0 %1276
          %1280 = vrot.lane.b32.xlu0 %v1270, 96
          %v1281 = vpop.permute.xlu0 %1280
          %vm1283 = vcmask 261120
          %v1284 = vsel %vm1283, %v1234, %v1273
          %vm1285 = vcmask 523264
          %v1286 = vsel %vm1285, %v1284, %v1277
          %vm1287 = vcmask 785408
          %v1288 = vsel %vm1287, %v1286, %v1281
          %v1289 = vld [vmem:[#allocation5] sm:$0xff]
          %v1290 = vadd.f32 %v1288, %v1289
          %1291 = vst [vmem:[%s285] sm:$0xff] %v1290
        $region52: #{causal_shaped_attention_forward.3} parent=35 // pred_fallthru
          _
        %s1292 = sand.u32 %s153, 1
        %s1293 = scalar_lea.sflag [#allocation7], %s1292
        %s1294 = sand.u32 %s153, 1
        %s1295 = smul.addr %s1294, 8
        %s1296 = scalar_lea.vmem [#allocation9], %s1295
        // Predicated region
        $region53: #{causal_shaped_attention_forward.3} parent=35 // pred_check
          %p1297 = pneg %p163
        $region54: #{causal_shaped_attention_forward.3} parent=35 // pred_check_branch
          %1299 = sbr.rel (%p1297) target = $region56
        $region55: #{causal_shaped_attention_forward.3} parent=35 // pred_region
          %s1301 = ssub.s32 128, 128
          %1302 = vsyncadd %s1293, %s1301
          %s1303 = smul.addr %s24, 4
          %s1304 = sadd.s32 %s25, %s1303
          %s1305 = smul.addr %s1304, 128
          %s1306 = scalar_lea.hbm %s4, %s1305
          %s1308 = sshll.u32 %s1296, 4
          %s1309 = int_to_ptr.vmem [resolvable:$true] %s1308
          %1311 = dma.vmem_to_hbm [thread:$0]  %s1309, 128, %s1306, %s1293
        $region56: #{causal_shaped_attention_forward.3} parent=35 // pred_fallthru
          _
      $region36: #{causal_shaped_attention_forward.3} parent=5 // pred_fallthru
        _
      %p1312 = scmp.le.s32.totalorder 2, %s14
      // Predicated region
      $region57: #{causal_shaped_attention_forward.3} parent=5 // pred_check
        %p1313 = pneg %p1312
      $region58: #{causal_shaped_attention_forward.3} parent=5 // pred_check_branch
        %1315 = sbr.rel (%p1313) target = $region60
      $region59: #{causal_shaped_attention_forward.3} parent=5 // pred_region
        %s1316 = ssub.s32 %s14, 2
        // Predicated region
        $region61: #{causal_shaped_attention_forward.3} parent=59 // pred_check
          %p1317 = pneg %p169
        $region62: #{causal_shaped_attention_forward.3} parent=59 // pred_check_branch
          %1319 = sbr.rel (%p1317) target = $region64
        $region63: #{causal_shaped_attention_forward.3} parent=59 // pred_region
          %s1320 = sand.u32 %s154, 1
          %s1321 = scalar_lea.sflag [#allocation7], %s1320
          %s1322 = sand.u32 %s154, 1
          %s1323 = smul.addr %s1322, 8
          %s1324 = scalar_lea.vmem [#allocation9], %s1323
          %1325 = dma.done %s1321, 128
        $region64: #{causal_shaped_attention_forward.3} parent=59 // pred_fallthru
          _
      $region60: #{causal_shaped_attention_forward.3} parent=5 // pred_fallthru
        _
    $region6: #{causal_shaped_attention_forward.3} parent=1 // loop_footer
      %s18 = sadd.s32 1, %s14
    $region7: #{causal_shaped_attention_forward.3} parent=1 // loop_footer_branch
      %13 = sbr.rel target = $region3
    $region8: #{causal_shaped_attention_forward.3} parent=1 // loop_exit
      _
    %1326 = vsyncpa [#allocation7], 1
    %s1327 = scalar_lea.sflag [#allocation7], 1
    %1328 = vsyncpa %s1327, 1
    %1329 = vsyncpa [#allocation8], 1
    %s1330 = scalar_lea.sflag [#allocation8], 1
    %1331 = vsyncpa %s1330, 1

</llo_original>
